<compile_context>
chip_gen: v5e
topology: v5e:2x2
jax: 0.10.0
libtpu: 0.0.40
codegen_flags: <defaults>
</compile_context>

<pallas_src>
import functools

import jax
import jax.numpy as jnp
from jax.experimental import pallas as pl
from jax.experimental.pallas import tpu as pltpu

_LANE = 128   # lane width / MXU column granularity
_SUB = 8      # f32 sublane granularity


def _round_up(v: int, m: int) -> int:
    return (v + m - 1) // m * m


# ---------------------------------------------------------------------------
# Kernels
# ---------------------------------------------------------------------------
def _edge_init_kernel(gat_col_ref, scat_row_ref, x_ref, e_ref,
                      wix_ref, wie_ref, bi_ref,
                      h0_ref, scat_ref, *, compute_dtype):
    """Per edge tile: h0 = relu(dense_init(cat(x[src], e)));  scat (+)= onehot @ h0."""
    t = pl.program_id(0)
    f32 = jnp.float32
    n_pad = x_ref.shape[0]
    te = gat_col_ref.shape[0]

    # One-hot gather of x[src]: [te, N_pad] one-hot (iota along lanes, index as a
    # column) -> plain jnp.dot, no transposed contraction.  x_ref is already in
    # compute_dtype (cast once in the wrapper, not per tile).
    lane_iota = jax.lax.broadcasted_iota(jnp.int32, (te, n_pad), 1)
    g = (lane_iota == gat_col_ref[...]).astype(compute_dtype)           # [te, N_pad]
    x_src = jnp.dot(g, x_ref[...], preferred_element_type=f32)          # [te, F_in]

    # dense_init with the concat folded into split weights (kept f32 for accuracy).
    h0 = jnp.dot(x_src, wix_ref[...], preferred_element_type=f32)
    h0 = h0 + jnp.dot(e_ref[...], wie_ref[...], preferred_element_type=f32)
    h0 = jnp.maximum(h0 + bi_ref[...], 0.0)                             # [te, H_pad]
    h0_ref[...] = h0

    # Scatter-add into the VMEM-resident accumulator (padded edges: idx=-1 -> no hit).
    node_iota = jax.lax.broadcasted_iota(jnp.int32, (n_pad, te), 0)
    d = (node_iota == scat_row_ref[...]).astype(compute_dtype)          # [N_pad, te]
    contrib = jnp.dot(d, h0.astype(compute_dtype), preferred_element_type=f32)

    @pl.when(t == 0)
    def _():
        scat_ref[...] = contrib            # overwrite on first tile (no zero-init pass)

    @pl.when(t > 0)
    def _():
        scat_ref[...] = scat_ref[...] + contrib


def _fused_step_kernel(gat_col_ref, dst_row_ref, src_row_ref,
                       hscat0_ref, h0_ref, w1_ref, b1_ref, w2_ref, b2_ref,
                       m_ref, h_scr, acc_scr, gsrc_scr, *, compute_dtype):
    """All D-MPNN steps fused: grid=(steps, edge_tiles).  h, h0 and the scatter
    accumulator stay VMEM-resident across the whole loop; only the final
    per-node message m is written back to HBM."""
    s = pl.program_id(0)
    t = pl.program_id(1)
    last_s = pl.num_programs(0) - 1
    last_t = pl.num_programs(1) - 1
    f32 = jnp.float32
    n_pad = acc_scr.shape[0]
    te = gat_col_ref.shape[0]

    # Once at the very start: edge state <- h0, accumulator <- init-call scatter.
    @pl.when((s == 0) & (t == 0))
    def _():
        h_scr[...] = h0_ref[...]
        acc_scr[...] = hscat0_ref[...]

    # Once per step (tile 0): snapshot last step's scatter result as this step's
    # gather source, cast to compute_dtype ONCE (not per edge tile).  The
    # accumulator is then rebuilt from this step's tile contributions.
    @pl.when(t == 0)
    def _():
        gsrc_scr[...] = acc_scr[...].astype(compute_dtype)

    e0 = pl.multiple_of(t * te, te)
    h_prev = h_scr[pl.ds(e0, te), :]                                    # [te, H_pad]
    h0_t = h0_ref[pl.ds(e0, te), :]

    # Gather h_scat[dst] via one-hot matmul (lane-axis iota -> plain dot).
    lane_iota = jax.lax.broadcasted_iota(jnp.int32, (te, n_pad), 1)
    g = (lane_iota == gat_col_ref[...]).astype(compute_dtype)           # [te, N_pad]
    h_gath = jnp.dot(g, gsrc_scr[...], preferred_element_type=f32)      # [te, H_pad]

    m = h_gath - h_prev
    hid = jnp.maximum(jnp.dot(m, w1_ref[...], preferred_element_type=f32)
                      + b1_ref[...], 0.0)
    hid = jnp.dot(hid, w2_ref[...], preferred_element_type=f32) + b2_ref[...]
    h_new = jnp.maximum(h0_t + hid, 0.0)                                # [te, H_pad]
    h_scr[pl.ds(e0, te), :] = h_new

    # Scatter-add h_new (by dst on intermediate steps, by src on the last step).
    is_last_step = s == last_s
    scat_idx = jnp.where(is_last_step, src_row_ref[...], dst_row_ref[...])   # [1, te]
    node_iota = jax.lax.broadcasted_iota(jnp.int32, (n_pad, te), 0)
    d = (node_iota == scat_idx).astype(compute_dtype)                   # [N_pad, te]
    contrib = jnp.dot(d, h_new.astype(compute_dtype), preferred_element_type=f32)

    @pl.when(t == 0)
    def _():
        acc_scr[...] = contrib             # overwrite on first tile of each step

    @pl.when(t > 0)
    def _():
        acc_scr[...] = acc_scr[...] + contrib

    # Final per-node message written back once, at the very last grid point.
    @pl.when(is_last_step & (t == last_t))
    def _():
        m_ref[...] = acc_scr[...]


def _node_final_kernel(x_ref, m_ref, wfx_ref, wfm_ref, bf_ref, gamma_ref, beta_ref,
                       o_ref, *, h_valid):
    """Per node tile: relu(dense_final(cat(x, m))) -> LayerNorm -> ReLU."""
    f32 = jnp.float32
    hf = jnp.dot(x_ref[...], wfx_ref[...], preferred_element_type=f32)
    hf = hf + jnp.dot(m_ref[...], wfm_ref[...], preferred_element_type=f32)
    hf = jnp.maximum(hf + bf_ref[...], 0.0)                             # [tN, H_pad]

    # LayerNorm over the h_valid real features; padded lanes of hf are exactly 0
    # (zero-padded weights/bias), so masked sums / H give the exact statistics.
    lane = jax.lax.broadcasted_iota(jnp.int32, hf.shape, 1)
    valid = lane < h_valid
    inv_h = 1.0 / float(h_valid)
    mean = jnp.sum(hf, axis=-1, keepdims=True) * inv_h
    diff = jnp.where(valid, hf - mean, 0.0)
    var = jnp.sum(diff * diff, axis=-1, keepdims=True) * inv_h
    normed = diff * jax.lax.rsqrt(var + 1e-5)
    y = normed * gamma_ref[...] + beta_ref[...]   # padded gamma/beta are 0 -> y pad = 0

    # final ReLU; dropout is identity in eval mode.
    # TODO(synk): nn.Dropout(p>0) treated as identity (inference semantics).
    o_ref[...] = jnp.maximum(y, 0.0)


# ---------------------------------------------------------------------------
# Wrapper
# ---------------------------------------------------------------------------
def directed_message_passing(x, edge_feats, edge_index, params, steps,
                             *, compute_dtype=jnp.bfloat16,
                             tile_e=None, tile_n=None, vmem_limit_bytes=None):
    f32 = jnp.float32
    N, F_in = x.shape
    E, F_edge = edge_feats.shape
    H = params["b_init"].shape[-1]

    H_pad = _round_up(H, _LANE)

    # Node tiling (final kernel).  >=2 tiles lets the "parallel" axis shard over
    # both v7x TensorCores once N is large enough.
    N_sub = _round_up(N, _SUB)
    if tile_n is None:
        tile_n = min(N_sub, 512)
    N_pad = _round_up(N_sub, tile_n)
    n_tn = N_pad // tile_n

    # Edge tiling.  Bigger tiles amortize the ~0.35us per-grid-step overhead; the
    # [N_pad, tile_e] one-hot temporaries bound tile_e (tile_e must stay a
    # multiple of 128 for lane-dense blocks).
    if tile_e is None:
        tile_e = min(_round_up(E, _LANE), 1024)
        while tile_e > _LANE and N_pad * tile_e * 4 > (8 << 20):
            tile_e //= 2
    E_pad = _round_up(E, tile_e)
    n_te = E_pad // tile_e

    # Chip-aware scoped-VMEM budget: v5e/v6e have 128 MiB physical VMEM, v7x 64 MiB.
    if vmem_limit_bytes is None:
        cap = 64 * 1024 * 1024
        try:
            cap = int(pltpu.get_tpu_info().vmem_capacity_bytes)
        except Exception:
            pass
        vmem_limit_bytes = max(32 * 1024 * 1024, min(3 * cap // 4, 100 * 1024 * 1024))

    # ---- operands: pad rows only; feature dims stay lane-unpadded (legal since
    #      block last dim == full array dim), H is padded to 128 lanes.
    xp = jnp.zeros((N_pad, F_in), f32).at[:N].set(x.astype(f32))
    xg = xp.astype(compute_dtype)            # gather operand cast ONCE, not per tile
    ep = jnp.zeros((E_pad, F_edge), f32).at[:E].set(edge_feats.astype(f32))

    src = edge_index[0].astype(jnp.int32)
    dst = edge_index[1].astype(jnp.int32)
    pad_idx = jnp.full((E_pad,), -1, jnp.int32)         # padded edges never match
    src_p = pad_idx.at[:E].set(src)
    dst_p = pad_idx.at[:E].set(dst)
    src_col, dst_col = src_p[:, None], dst_p[:, None]   # [E_pad, 1]  (gather form)
    src_row, dst_row = src_p[None, :], dst_p[None, :]   # [1, E_pad]  (scatter form)

    def pad2(a, rows, cols):
        a = a.astype(f32)
        return jnp.zeros((rows, cols), f32).at[:a.shape[0], :a.shape[1]].set(a)

    wix = pad2(params["w_init_x"], F_in, H_pad)
    wie = pad2(params["w_init_e"], F_edge, H_pad)
    bi = pad2(params["b_init"], 1, H_pad)
    wh1 = pad2(params["w_h1"], H_pad, H_pad)
    bh1 = pad2(params["b_h1"], 1, H_pad)
    wh2 = pad2(params["w_h2"], H_pad, H_pad)
    bh2 = pad2(params["b_h2"], 1, H_pad)
    wfx = pad2(params["w_fin_x"], F_in, H_pad)
    wfm = pad2(params["w_fin_m"], H_pad, H_pad)
    bfin = pad2(params["b_fin"], 1, H_pad)
    gamma = pad2(params["gamma"], 1, H_pad)
    beta = pad2(params["beta"], 1, H_pad)

    # ---- BlockSpecs (all satisfy the (8,128)-or-full-dim rule; H outputs lane-dense).
    def full1(rows, cols):
        return pl.BlockSpec((rows, cols), lambda t: (0, 0))

    def full2(rows, cols):
        return pl.BlockSpec((rows, cols), lambda s, t: (0, 0))

    acc1 = pltpu.CompilerParams(dimension_semantics=("arbitrary",),
                                vmem_limit_bytes=vmem_limit_bytes)
    acc2 = pltpu.CompilerParams(dimension_semantics=("arbitrary", "arbitrary"),
                                vmem_limit_bytes=vmem_limit_bytes)
    par1 = pltpu.CompilerParams(dimension_semantics=("parallel",),
                                vmem_limit_bytes=vmem_limit_bytes)

    onehot_flops = 2 * E_pad * N_pad * H_pad   # one gather or scatter sweep over edges

    init_call = pl.pallas_call(
        functools.partial(_edge_init_kernel, compute_dtype=compute_dtype),
        grid=(n_te,),
        in_specs=[pl.BlockSpec((tile_e, 1), lambda t: (t, 0)),        # gather idx (src)
                  pl.BlockSpec((1, tile_e), lambda t: (0, t)),        # scatter idx
                  full1(N_pad, F_in),                                 # x (compute_dtype)
                  pl.BlockSpec((tile_e, F_edge), lambda t: (t, 0)),   # edge feats
                  full1(F_in, H_pad), full1(F_edge, H_pad), full1(1, H_pad)],
        out_specs=(pl.BlockSpec((tile_e, H_pad), lambda t: (t, 0)),   # h0 per edge
                   full1(N_pad, H_pad)),                              # scatter result
        out_shape=(jax.ShapeDtypeStruct((E_pad, H_pad), f32),
                   jax.ShapeDtypeStruct((N_pad, H_pad), f32)),
        compiler_params=acc1,
        cost_estimate=pl.CostEstimate(
            flops=int(2 * E_pad * N_pad * F_in + onehot_flops
                      + 2 * E_pad * (F_in + F_edge) * H_pad),
            transcendentals=0,
            bytes_accessed=int(2 * N_pad * F_in + 4 * E_pad * F_edge
                               + 4 * (F_in + F_edge + 1) * H_pad
                               + 4 * (E_pad + N_pad) * H_pad + 8 * E_pad)),
    )

    final_call = pl.pallas_call(
        functools.partial(_node_final_kernel, h_valid=H),
        grid=(n_tn,),
        in_specs=[pl.BlockSpec((tile_n, F_in), lambda t: (t, 0)),
                  pl.BlockSpec((tile_n, H_pad), lambda t: (t, 0)),
                  full1(F_in, H_pad), full1(H_pad, H_pad), full1(1, H_pad),
                  full1(1, H_pad), full1(1, H_pad)],
        out_specs=pl.BlockSpec((tile_n, H_pad), lambda t: (t, 0)),
        out_shape=jax.ShapeDtypeStruct((N_pad, H_pad), f32),
        compiler_params=par1,
        cost_estimate=pl.CostEstimate(
            flops=int(2 * N_pad * (F_in + H_pad) * H_pad + 12 * N_pad * H_pad),
            transcendentals=int(N_pad),
            bytes_accessed=int(4 * (N_pad * (F_in + 2 * H_pad)
                                    + (F_in + H_pad) * H_pad + 5 * H_pad))),
    )

    # ---- pipeline ------------------------------------------------------------
    # init: h0 per edge and h_scat = scatter_add(h0, dst) (by src if no steps).
    init_scat_row = dst_row if steps > 0 else src_row
    h0, h_scat = init_call(src_col, init_scat_row, xg, ep, wix, wie, bi)

    if steps > 0:
        step_call = pl.pallas_call(
            functools.partial(_fused_step_kernel, compute_dtype=compute_dtype),
            grid=(steps, n_te),
            in_specs=[pl.BlockSpec((tile_e, 1), lambda s, t: (t, 0)),   # gather idx (dst)
                      pl.BlockSpec((1, tile_e), lambda s, t: (0, t)),   # scatter idx dst
                      pl.BlockSpec((1, tile_e), lambda s, t: (0, t)),   # scatter idx src
                      full2(N_pad, H_pad),                              # initial h_scat
                      full2(E_pad, H_pad),                              # h0 (resident)
                      full2(H_pad, H_pad), full2(1, H_pad),
                      full2(H_pad, H_pad), full2(1, H_pad)],
            out_specs=full2(N_pad, H_pad),
            out_shape=jax.ShapeDtypeStruct((N_pad, H_pad), f32),
            scratch_shapes=[pltpu.VMEM((E_pad, H_pad), f32),            # per-edge h
                            pltpu.VMEM((N_pad, H_pad), f32),            # scatter acc
                            pltpu.VMEM((N_pad, H_pad), compute_dtype)], # gather source
            compiler_params=acc2,
            cost_estimate=pl.CostEstimate(
                flops=int(steps * (2 * onehot_flops + 4 * E_pad * H_pad * H_pad)),
                transcendentals=0,
                bytes_accessed=int(4 * (E_pad * H_pad + 2 * N_pad * H_pad
                                        + 2 * H_pad * H_pad + 2 * H_pad)
                                   + 12 * E_pad)),
        )
        m_node = step_call(dst_col, dst_row, src_row, h_scat, h0,
                           wh1, bh1, wh2, bh2)
    else:
        m_node = h_scat

    out = final_call(xp, m_node, wfx, wfm, bfin, gamma, beta)
    return out[:N, :H]


# ---------------------------------------------------------------------------
# Pure-JAX reference mirroring the PyTorch forward (cast-aware for bf16 path)
# ---------------------------------------------------------------------------
def reference(x, edge_feats, edge_index, p, steps, cast_dtype=jnp.float32):
    f32 = jnp.float32

    def cast(v):  # mirrors the kernel's operand cast at gather/scatter boundaries
        return v.astype(cast_dtype).astype(f32)

    src, dst = edge_index[0], edge_index[1]
    N = x.shape[0]
    h0 = jax.nn.relu(cast(x)[src] @ p["w_init_x"] + edge_feats @ p["w_init_e"]
                     + p["b_init"])
    h = h0
    for _ in range(steps):
        h_scat = jax.ops.segment_sum(cast(h), dst, num_segments=N)
        m = cast(h_scat)[dst] - h
        hid = jax.nn.relu(m @ p["w_h1"] + p["b_h1"]) @ p["w_h2"] + p["b_h2"]
        h = jax.nn.relu(h0 + hid)
    m_node = jax.ops.segment_sum(cast(h), src, num_segments=N)
    hf = jax.nn.relu(x @ p["w_fin_x"] + m_node @ p["w_fin_m"] + p["b_fin"])
    mean = hf.mean(-1, keepdims=True)
    var = ((hf - mean) ** 2).mean(-1, keepdims=True)
    y = (hf - mean) / jnp.sqrt(var + 1e-5) * p["gamma"] + p["beta"]
    return jax.nn.relu(y)


if __name__ == "__main__":
    key = jax.random.PRNGKey(0)
    N, E = 8, 16                 # nodes, directed edges
    F_IN, F_EDGE, H = 16, 8, 32  # input_size, edge_in, output_size
    STEPS = 3

    ks = jax.random.split(key, 16)

    def lin(k, fan_in, shape):
        bound = 1.0 / (fan_in ** 0.5)
        return jax.random.uniform(k, shape, jnp.float32, -bound, bound)

    params = {
        # dense_init: Linear(F_IN + F_EDGE -> H), weight split for the folded concat
        "w_init_x": lin(ks[0], F_IN + F_EDGE, (F_IN, H)),
        "w_init_e": lin(ks[1], F_IN + F_EDGE, (F_EDGE, H)),
        "b_init":   lin(ks[2], F_IN + F_EDGE, (1, H)),
        # dense_hidden: Linear(H->H), ReLU, Linear(H->H)
        "w_h1": lin(ks[3], H, (H, H)),
        "b_h1": lin(ks[4], H, (1, H)),
        "w_h2": lin(ks[5], H, (H, H)),
        "b_h2": lin(ks[6], H, (1, H)),
        # dense_final: Linear(F_IN + H -> H), weight split for the folded concat
        "w_fin_x": lin(ks[7], F_IN + H, (F_IN, H)),
        "w_fin_m": lin(ks[8], F_IN + H, (H, H)),
        "b_fin":   lin(ks[9], F_IN + H, (1, H)),
        # LayerNorm(H): torch default affine init
        "gamma": jnp.ones((1, H), jnp.float32),
        "beta":  jnp.zeros((1, H), jnp.float32),
    }

    x = jax.random.normal(ks[10], (N, F_IN), jnp.float32)
    edge_feats = jax.random.normal(ks[11], (E, F_EDGE), jnp.float32)
    src = jax.random.randint(ks[12], (E,), 0, N, jnp.int32)
    dst = jax.random.randint(ks[13], (E,), 0, N, jnp.int32)
    edge_index = jnp.stack([src, dst], axis=0)

    dmp = jax.jit(directed_message_passing,
                  static_argnames=("steps", "compute_dtype", "tile_e", "tile_n",
                                   "vmem_limit_bytes"))

    # bf16 gather/scatter path (default) vs cast-aware reference.
    out_bf16 = jax.block_until_ready(
        dmp(x, edge_feats, edge_index, params, steps=STEPS,
            compute_dtype=jnp.bfloat16))
    ref_bf16 = reference(x, edge_feats, edge_index, params, STEPS,
                         cast_dtype=jnp.bfloat16)
    err_bf16 = float(jnp.max(jnp.abs(out_bf16 - ref_bf16)))
    assert jnp.allclose(out_bf16, ref_bf16, atol=2e-2, rtol=2e-2), \
        f"bf16 path max abs err {err_bf16}"

    # Full-f32 path vs plain f32 reference.
    out_f32 = jax.block_until_ready(
        dmp(x, edge_feats, edge_index, params, steps=STEPS,
            compute_dtype=jnp.float32))
    ref_f32 = reference(x, edge_feats, edge_index, params, STEPS,
                        cast_dtype=jnp.float32)
    err_f32 = float(jnp.max(jnp.abs(out_f32 - ref_f32)))
    assert jnp.allclose(out_f32, ref_f32, atol=5e-3, rtol=5e-3), \
        f"f32 path max abs err {err_f32}"

    # steps=0 edge case exercises the init-scatter-by-src path.
    out_s0 = jax.block_until_ready(
        dmp(x, edge_feats, edge_index, params, steps=0, compute_dtype=jnp.float32))
    ref_s0 = reference(x, edge_feats, edge_index, params, 0, cast_dtype=jnp.float32)
    assert jnp.allclose(out_s0, ref_s0, atol=5e-3, rtol=5e-3), "steps=0 path mismatch"

    print("KERNEL_OK")
</pallas_src>

<mosaic_0001>
module attributes {stable_mosaic.version = 11 : i64} {
  func.func @_edge_init_kernel(%arg0: i32, %arg1: memref<128x1xi32, #tpu.memory_space<vmem>>, %arg2: memref<1x128xi32, #tpu.memory_space<vmem>>, %arg3: memref<8x16xbf16, #tpu.memory_space<vmem>>, %arg4: memref<128x8xf32, #tpu.memory_space<vmem>>, %arg5: memref<16x128xf32, #tpu.memory_space<vmem>>, %arg6: memref<8x128xf32, #tpu.memory_space<vmem>>, %arg7: memref<1x128xf32, #tpu.memory_space<vmem>>, %arg8: memref<128x128xf32, #tpu.memory_space<vmem>>, %arg9: memref<8x128xf32, #tpu.memory_space<vmem>>) attributes {dimension_semantics = [#tpu.dimension_semantics<arbitrary>], iteration_bounds = array<i64: 1>, scalar_prefetch = 0 : i64, scratch_operands = 0 : i64, tpu.core_type = #tpu.core_type<tc>, window_params = [{transform_indices = @transform_0, window_bounds = array<i64: 128, 1>}, {transform_indices = @transform_1, window_bounds = array<i64: 1, 128>}, {pipeline_mode = #tpu.pipeline_mode<synchronous>, transform_indices = @transform_2, window_bounds = array<i64: 8, 16>}, {transform_indices = @transform_3, window_bounds = array<i64: 128, 8>}, {pipeline_mode = #tpu.pipeline_mode<synchronous>, transform_indices = @transform_4, window_bounds = array<i64: 16, 128>}, {pipeline_mode = #tpu.pipeline_mode<synchronous>, transform_indices = @transform_5, window_bounds = array<i64: 8, 128>}, {pipeline_mode = #tpu.pipeline_mode<synchronous>, transform_indices = @transform_6, window_bounds = array<i64: 1, 128>}, {transform_indices = @transform_7, window_bounds = array<i64: 128, 128>}, {pipeline_mode = #tpu.pipeline_mode<synchronous>, transform_indices = @transform_8, window_bounds = array<i64: 8, 128>}]} {
    %0 = tpu.iota {dimensions = array<i32: 1>} : vector<128x8xi32>
    %c0 = arith.constant 0 : index
    %c0_0 = arith.constant 0 : index
    %1 = vector.load %arg1[%c0, %c0_0] : memref<128x1xi32, #tpu.memory_space<vmem>>, vector<128x1xi32>
    %2 = vector.broadcast %1 : vector<128x1xi32> to vector<128x8xi32>
    %3 = arith.cmpi eq, %0, %2 : vector<128x8xi32>
    %4 = arith.extui %3 : vector<128x8xi1> to vector<128x8xi32>
    %5 = arith.sitofp %4 : vector<128x8xi32> to vector<128x8xf32>
    %6 = arith.truncf %5 : vector<128x8xf32> to vector<128x8xbf16>
    %c0_1 = arith.constant 0 : index
    %c0_2 = arith.constant 0 : index
    %7 = vector.load %arg3[%c0_1, %c0_2] : memref<8x16xbf16, #tpu.memory_space<vmem>>, vector<8x16xbf16>
    %cst = arith.constant dense<0.000000e+00> : vector<128x16xf32>
    %8 = tpu.matmul %6, %7, %cst {dimension_numbers = #tpu.dot_dimension_numbers<[1], [0], [0], [1], [0, 0, 1, 1], [], []>} : vector<128x8xbf16>, vector<8x16xbf16>, vector<128x16xf32> -> vector<128x16xf32>
    %c0_3 = arith.constant 0 : index
    %c0_4 = arith.constant 0 : index
    %9 = vector.load %arg5[%c0_3, %c0_4] : memref<16x128xf32, #tpu.memory_space<vmem>>, vector<16x128xf32>
    %cst_5 = arith.constant dense<0.000000e+00> : vector<128x128xf32>
    %10 = tpu.matmul %8, %9, %cst_5 {dimension_numbers = #tpu.dot_dimension_numbers<[1], [0], [0], [1], [0, 0, 1, 1], [], []>} : vector<128x16xf32>, vector<16x128xf32>, vector<128x128xf32> -> vector<128x128xf32>
    %c0_6 = arith.constant 0 : index
    %c0_7 = arith.constant 0 : index
    %11 = vector.load %arg4[%c0_6, %c0_7] : memref<128x8xf32, #tpu.memory_space<vmem>>, vector<128x8xf32>
    %c0_8 = arith.constant 0 : index
    %c0_9 = arith.constant 0 : index
    %12 = vector.load %arg6[%c0_8, %c0_9] : memref<8x128xf32, #tpu.memory_space<vmem>>, vector<8x128xf32>
    %cst_10 = arith.constant dense<0.000000e+00> : vector<128x128xf32>
    %13 = tpu.matmul %11, %12, %cst_10 {dimension_numbers = #tpu.dot_dimension_numbers<[1], [0], [0], [1], [0, 0, 1, 1], [], []>} : vector<128x8xf32>, vector<8x128xf32>, vector<128x128xf32> -> vector<128x128xf32>
    %14 = arith.addf %10, %13 : vector<128x128xf32>
    %c0_11 = arith.constant 0 : index
    %c0_12 = arith.constant 0 : index
    %15 = vector.load %arg7[%c0_11, %c0_12] : memref<1x128xf32, #tpu.memory_space<vmem>>, vector<1x128xf32>
    %16 = vector.broadcast %15 : vector<1x128xf32> to vector<128x128xf32>
    %17 = arith.addf %14, %16 : vector<128x128xf32>
    %cst_13 = arith.constant 0.000000e+00 : f32
    %18 = vector.broadcast %cst_13 : f32 to vector<128x128xf32>
    %19 = arith.maximumf %17, %18 : vector<128x128xf32>
    %c0_14 = arith.constant 0 : index
    %c0_15 = arith.constant 0 : index
    %20 = vector.load %arg8[%c0_14, %c0_15] : memref<128x128xf32, #tpu.memory_space<vmem>>, vector<128x128xf32>
    tpu.vector_store %arg8[%c0_14, %c0_15], %19 {strides = array<i32>} : memref<128x128xf32, #tpu.memory_space<vmem>>, vector<128x128xf32>,
    %21 = tpu.iota {dimensions = array<i32: 0>} : vector<8x128xi32>
    %c0_16 = arith.constant 0 : index
    %c0_17 = arith.constant 0 : index
    %22 = vector.load %arg2[%c0_16, %c0_17] : memref<1x128xi32, #tpu.memory_space<vmem>>, vector<1x128xi32>
    %23 = vector.broadcast %22 : vector<1x128xi32> to vector<8x128xi32>
    %24 = arith.cmpi eq, %21, %23 : vector<8x128xi32>
    %25 = arith.extui %24 : vector<8x128xi1> to vector<8x128xi32>
    %26 = arith.sitofp %25 : vector<8x128xi32> to vector<8x128xf32>
    %27 = arith.truncf %26 : vector<8x128xf32> to vector<8x128xbf16>
    %28 = arith.truncf %19 : vector<128x128xf32> to vector<128x128xbf16>
    %cst_18 = arith.constant dense<0.000000e+00> : vector<8x128xf32>
    %29 = tpu.matmul %27, %28, %cst_18 {dimension_numbers = #tpu.dot_dimension_numbers<[1], [0], [0], [1], [0, 0, 1, 1], [], []>} : vector<8x128xbf16>, vector<128x128xbf16>, vector<8x128xf32> -> vector<8x128xf32>
    %c0_i32 = arith.constant 0 : i32
    %30 = arith.cmpi eq, %arg0, %c0_i32 : i32
    %31 = arith.extui %30 : i1 to i32
    %c0_i32_19 = arith.constant 0 : i32
    %32 = arith.cmpi ne, %31, %c0_i32_19 : i32
    scf.if %32 {
      %c0_22 = arith.constant 0 : index
      %c0_23 = arith.constant 0 : index
      %36 = vector.load %arg9[%c0_22, %c0_23] : memref<8x128xf32, #tpu.memory_space<vmem>>, vector<8x128xf32>
      tpu.vector_store %arg9[%c0_22, %c0_23], %29 {strides = array<i32>} : memref<8x128xf32, #tpu.memory_space<vmem>>, vector<8x128xf32>,
    } else {
    }
    %c0_i32_20 = arith.constant 0 : i32
    %33 = arith.cmpi sgt, %arg0, %c0_i32_20 : i32
    %34 = arith.extui %33 : i1 to i32
    %c0_i32_21 = arith.constant 0 : i32
    %35 = arith.cmpi ne, %34, %c0_i32_21 : i32
    scf.if %35 {
      %c0_22 = arith.constant 0 : index
      %c0_23 = arith.constant 0 : index
      %36 = vector.load %arg9[%c0_22, %c0_23] : memref<8x128xf32, #tpu.memory_space<vmem>>, vector<8x128xf32>
      %37 = arith.addf %36, %29 : vector<8x128xf32>
      %c0_24 = arith.constant 0 : index
      %c0_25 = arith.constant 0 : index
      %38 = vector.load %arg9[%c0_24, %c0_25] : memref<8x128xf32, #tpu.memory_space<vmem>>, vector<8x128xf32>
      tpu.vector_store %arg9[%c0_24, %c0_25], %37 {strides = array<i32>} : memref<8x128xf32, #tpu.memory_space<vmem>>, vector<8x128xf32>,
    } else {
    }
    return
  }
  func.func @transform_0(%arg0: i32) -> (i32, i32) {
    %c0_i32 = arith.constant 0 : i32
    %c0_i32_0 = arith.constant 0 : i32
    return %arg0, %c0_i32 : i32, i32
  }
  func.func @transform_1(%arg0: i32) -> (i32, i32) {
    %c0_i32 = arith.constant 0 : i32
    %c0_i32_0 = arith.constant 0 : i32
    return %c0_i32, %arg0 : i32, i32
  }
  func.func @transform_2(%arg0: i32) -> (i32, i32) {
    %c0_i32 = arith.constant 0 : i32
    %c0_i32_0 = arith.constant 0 : i32
    %c0_i32_1 = arith.constant 0 : i32
    return %c0_i32, %c0_i32_0 : i32, i32
  }
  func.func @transform_3(%arg0: i32) -> (i32, i32) {
    %c0_i32 = arith.constant 0 : i32
    %c0_i32_0 = arith.constant 0 : i32
    return %arg0, %c0_i32 : i32, i32
  }
  func.func @transform_4(%arg0: i32) -> (i32, i32) {
    %c0_i32 = arith.constant 0 : i32
    %c0_i32_0 = arith.constant 0 : i32
    %c0_i32_1 = arith.constant 0 : i32
    return %c0_i32, %c0_i32_0 : i32, i32
  }
  func.func @transform_5(%arg0: i32) -> (i32, i32) {
    %c0_i32 = arith.constant 0 : i32
    %c0_i32_0 = arith.constant 0 : i32
    %c0_i32_1 = arith.constant 0 : i32
    return %c0_i32, %c0_i32_0 : i32, i32
  }
  func.func @transform_6(%arg0: i32) -> (i32, i32) {
    %c0_i32 = arith.constant 0 : i32
    %c0_i32_0 = arith.constant 0 : i32
    %c0_i32_1 = arith.constant 0 : i32
    return %c0_i32, %c0_i32_0 : i32, i32
  }
  func.func @transform_7(%arg0: i32) -> (i32, i32) {
    %c0_i32 = arith.constant 0 : i32
    %c0_i32_0 = arith.constant 0 : i32
    return %arg0, %c0_i32 : i32, i32
  }
  func.func @transform_8(%arg0: i32) -> (i32, i32) {
    %c0_i32 = arith.constant 0 : i32
    %c0_i32_0 = arith.constant 0 : i32
    %c0_i32_1 = arith.constant 0 : i32
    return %c0_i32, %c0_i32_0 : i32, i32
  }
}

module attributes {stable_mosaic.version = 11 : i64} {
  func.func @_fused_step_kernel(%arg0: i32, %arg1: i32, %arg2: memref<128x1xi32, #tpu.memory_space<vmem>>, %arg3: memref<1x128xi32, #tpu.memory_space<vmem>>, %arg4: memref<1x128xi32, #tpu.memory_space<vmem>>, %arg5: memref<8x128xf32, #tpu.memory_space<vmem>>, %arg6: memref<128x128xf32, #tpu.memory_space<vmem>>, %arg7: memref<128x128xf32, #tpu.memory_space<vmem>>, %arg8: memref<1x128xf32, #tpu.memory_space<vmem>>, %arg9: memref<128x128xf32, #tpu.memory_space<vmem>>, %arg10: memref<1x128xf32, #tpu.memory_space<vmem>>, %arg11: memref<8x128xf32, #tpu.memory_space<vmem>>, %arg12: memref<128x128xf32, #tpu.memory_space<vmem>>, %arg13: memref<8x128xf32, #tpu.memory_space<vmem>>, %arg14: memref<8x128xbf16, #tpu.memory_space<vmem>>) attributes {dimension_semantics = [#tpu.dimension_semantics<arbitrary>, #tpu.dimension_semantics<arbitrary>], iteration_bounds = array<i64: 3, 1>, scalar_prefetch = 0 : i64, scratch_operands = 3 : i64, tpu.core_type = #tpu.core_type<tc>, window_params = [{transform_indices = @transform_0, window_bounds = array<i64: 128, 1>}, {transform_indices = @transform_1, window_bounds = array<i64: 1, 128>}, {transform_indices = @transform_2, window_bounds = array<i64: 1, 128>}, {pipeline_mode = #tpu.pipeline_mode<synchronous>, transform_indices = @transform_3, window_bounds = array<i64: 8, 128>}, {pipeline_mode = #tpu.pipeline_mode<synchronous>, transform_indices = @transform_4, window_bounds = array<i64: 128, 128>}, {pipeline_mode = #tpu.pipeline_mode<synchronous>, transform_indices = @transform_5, window_bounds = array<i64: 128, 128>}, {pipeline_mode = #tpu.pipeline_mode<synchronous>, transform_indices = @transform_6, window_bounds = array<i64: 1, 128>}, {pipeline_mode = #tpu.pipeline_mode<synchronous>, transform_indices = @transform_7, window_bounds = array<i64: 128, 128>}, {pipeline_mode = #tpu.pipeline_mode<synchronous>, transform_indices = @transform_8, window_bounds = array<i64: 1, 128>}, {pipeline_mode = #tpu.pipeline_mode<synchronous>, transform_indices = @transform_9, window_bounds = array<i64: 8, 128>}]} {
    %c0_i32 = arith.constant 0 : i32
    %0 = arith.cmpi eq, %arg0, %c0_i32 : i32
    %c0_i32_0 = arith.constant 0 : i32
    %1 = arith.cmpi eq, %arg1, %c0_i32_0 : i32
    %2 = arith.andi %0, %1 : i1
    %3 = arith.extui %2 : i1 to i32
    %c0_i32_1 = arith.constant 0 : i32
    %4 = arith.cmpi ne, %3, %c0_i32_1 : i32
    scf.if %4 {
      %c0_33 = arith.constant 0 : index
      %c0_34 = arith.constant 0 : index
      %63 = vector.load %arg6[%c0_33, %c0_34] : memref<128x128xf32, #tpu.memory_space<vmem>>, vector<128x128xf32>
      %c0_35 = arith.constant 0 : index
      %c0_36 = arith.constant 0 : index
      %64 = vector.load %arg12[%c0_35, %c0_36] : memref<128x128xf32, #tpu.memory_space<vmem>>, vector<128x128xf32>
      tpu.vector_store %arg12[%c0_35, %c0_36], %63 {strides = array<i32>} : memref<128x128xf32, #tpu.memory_space<vmem>>, vector<128x128xf32>,
      %c0_37 = arith.constant 0 : index
      %c0_38 = arith.constant 0 : index
      %65 = vector.load %arg5[%c0_37, %c0_38] : memref<8x128xf32, #tpu.memory_space<vmem>>, vector<8x128xf32>
      %c0_39 = arith.constant 0 : index
      %c0_40 = arith.constant 0 : index
      %66 = vector.load %arg13[%c0_39, %c0_40] : memref<8x128xf32, #tpu.memory_space<vmem>>, vector<8x128xf32>
      tpu.vector_store %arg13[%c0_39, %c0_40], %65 {strides = array<i32>} : memref<8x128xf32, #tpu.memory_space<vmem>>, vector<8x128xf32>,
    } else {
    }
    %c0_i32_2 = arith.constant 0 : i32
    %5 = arith.cmpi eq, %arg1, %c0_i32_2 : i32
    %6 = arith.extui %5 : i1 to i32
    %c0_i32_3 = arith.constant 0 : i32
    %7 = arith.cmpi ne, %6, %c0_i32_3 : i32
    scf.if %7 {
      %c0_33 = arith.constant 0 : index
      %c0_34 = arith.constant 0 : index
      %63 = vector.load %arg13[%c0_33, %c0_34] : memref<8x128xf32, #tpu.memory_space<vmem>>, vector<8x128xf32>
      %64 = arith.truncf %63 : vector<8x128xf32> to vector<8x128xbf16>
      %c0_35 = arith.constant 0 : index
      %c0_36 = arith.constant 0 : index
      %65 = vector.load %arg14[%c0_35, %c0_36] : memref<8x128xbf16, #tpu.memory_space<vmem>>, vector<8x128xbf16>
      tpu.vector_store %arg14[%c0_35, %c0_36], %64 {strides = array<i32>} : memref<8x128xbf16, #tpu.memory_space<vmem>>, vector<8x128xbf16>,
    } else {
    }
    %c128_i32 = arith.constant 128 : i32
    %8 = arith.muli %arg1, %c128_i32 : i32
    %9 = tpu.assume_multiple %8, 128 : i32
    %10 = arith.index_cast %9 : i32 to index
    %c0 = arith.constant 0 : index
    %11 = vector.load %arg12[%10, %c0] : memref<128x128xf32, #tpu.memory_space<vmem>>, vector<128x128xf32>
    %12 = arith.index_cast %9 : i32 to index
    %c0_4 = arith.constant 0 : index
    %13 = vector.load %arg6[%12, %c0_4] : memref<128x128xf32, #tpu.memory_space<vmem>>, vector<128x128xf32>
    %14 = tpu.iota {dimensions = array<i32: 1>} : vector<128x8xi32>
    %c0_5 = arith.constant 0 : index
    %c0_6 = arith.constant 0 : index
    %15 = vector.load %arg2[%c0_5, %c0_6] : memref<128x1xi32, #tpu.memory_space<vmem>>, vector<128x1xi32>
    %16 = vector.broadcast %15 : vector<128x1xi32> to vector<128x8xi32>
    %17 = arith.cmpi eq, %14, %16 : vector<128x8xi32>
    %18 = arith.extui %17 : vector<128x8xi1> to vector<128x8xi32>
    %19 = arith.sitofp %18 : vector<128x8xi32> to vector<128x8xf32>
    %20 = arith.truncf %19 : vector<128x8xf32> to vector<128x8xbf16>
    %c0_7 = arith.constant 0 : index
    %c0_8 = arith.constant 0 : index
    %21 = vector.load %arg14[%c0_7, %c0_8] : memref<8x128xbf16, #tpu.memory_space<vmem>>, vector<8x128xbf16>
    %cst = arith.constant dense<0.000000e+00> : vector<128x128xf32>
    %22 = tpu.matmul %20, %21, %cst {dimension_numbers = #tpu.dot_dimension_numbers<[1], [0], [0], [1], [0, 0, 1, 1], [], []>} : vector<128x8xbf16>, vector<8x128xbf16>, vector<128x128xf32> -> vector<128x128xf32>
    %23 = arith.subf %22, %11 : vector<128x128xf32>
    %c0_9 = arith.constant 0 : index
    %c0_10 = arith.constant 0 : index
    %24 = vector.load %arg7[%c0_9, %c0_10] : memref<128x128xf32, #tpu.memory_space<vmem>>, vector<128x128xf32>
    %cst_11 = arith.constant dense<0.000000e+00> : vector<128x128xf32>
    %25 = tpu.matmul %23, %24, %cst_11 {dimension_numbers = #tpu.dot_dimension_numbers<[1], [0], [0], [1], [0, 0, 1, 1], [], []>} : vector<128x128xf32>, vector<128x128xf32>, vector<128x128xf32> -> vector<128x128xf32>
    %c0_12 = arith.constant 0 : index
    %c0_13 = arith.constant 0 : index
    %26 = vector.load %arg8[%c0_12, %c0_13] : memref<1x128xf32, #tpu.memory_space<vmem>>, vector<1x128xf32>
    %27 = vector.broadcast %26 : vector<1x128xf32> to vector<128x128xf32>
    %28 = arith.addf %25, %27 : vector<128x128xf32>
    %cst_14 = arith.constant 0.000000e+00 : f32
    %29 = vector.broadcast %cst_14 : f32 to vector<128x128xf32>
    %30 = arith.maximumf %28, %29 : vector<128x128xf32>
    %c0_15 = arith.constant 0 : index
    %c0_16 = arith.constant 0 : index
    %31 = vector.load %arg9[%c0_15, %c0_16] : memref<128x128xf32, #tpu.memory_space<vmem>>, vector<128x128xf32>
    %cst_17 = arith.constant dense<0.000000e+00> : vector<128x128xf32>
    %32 = tpu.matmul %30, %31, %cst_17 {dimension_numbers = #tpu.dot_dimension_numbers<[1], [0], [0], [1], [0, 0, 1, 1], [], []>} : vector<128x128xf32>, vector<128x128xf32>, vector<128x128xf32> -> vector<128x128xf32>
    %c0_18 = arith.constant 0 : index
    %c0_19 = arith.constant 0 : index
    %33 = vector.load %arg10[%c0_18, %c0_19] : memref<1x128xf32, #tpu.memory_space<vmem>>, vector<1x128xf32>
    %34 = vector.broadcast %33 : vector<1x128xf32> to vector<128x128xf32>
    %35 = arith.addf %32, %34 : vector<128x128xf32>
    %36 = arith.addf %13, %35 : vector<128x128xf32>
    %cst_20 = arith.constant 0.000000e+00 : f32
    %37 = vector.broadcast %cst_20 : f32 to vector<128x128xf32>
    %38 = arith.maximumf %36, %37 : vector<128x128xf32>
    %39 = arith.index_cast %9 : i32 to index
    %c0_21 = arith.constant 0 : index
    %40 = vector.load %arg12[%39, %c0_21] : memref<128x128xf32, #tpu.memory_space<vmem>>, vector<128x128xf32>
    tpu.vector_store %arg12[%39, %c0_21], %38 {strides = array<i32>} : memref<128x128xf32, #tpu.memory_space<vmem>>, vector<128x128xf32>,
    %c2_i32 = arith.constant 2 : i32
    %41 = arith.cmpi eq, %arg0, %c2_i32 : i32
    %c0_22 = arith.constant 0 : index
    %c0_23 = arith.constant 0 : index
    %42 = vector.load %arg4[%c0_22, %c0_23] : memref<1x128xi32, #tpu.memory_space<vmem>>, vector<1x128xi32>
    %c0_24 = arith.constant 0 : index
    %c0_25 = arith.constant 0 : index
    %43 = vector.load %arg3[%c0_24, %c0_25] : memref<1x128xi32, #tpu.memory_space<vmem>>, vector<1x128xi32>
    %44 = arith.select %41, %42, %43 : vector<1x128xi32>
    %45 = tpu.iota {dimensions = array<i32: 0>} : vector<8x128xi32>
    %46 = vector.broadcast %44 : vector<1x128xi32> to vector<8x128xi32>
    %47 = arith.cmpi eq, %45, %46 : vector<8x128xi32>
    %48 = arith.extui %47 : vector<8x128xi1> to vector<8x128xi32>
    %49 = arith.sitofp %48 : vector<8x128xi32> to vector<8x128xf32>
    %50 = arith.truncf %49 : vector<8x128xf32> to vector<8x128xbf16>
    %51 = arith.truncf %38 : vector<128x128xf32> to vector<128x128xbf16>
    %cst_26 = arith.constant dense<0.000000e+00> : vector<8x128xf32>
    %52 = tpu.matmul %50, %51, %cst_26 {dimension_numbers = #tpu.dot_dimension_numbers<[1], [0], [0], [1], [0, 0, 1, 1], [], []>} : vector<8x128xbf16>, vector<128x128xbf16>, vector<8x128xf32> -> vector<8x128xf32>
    %c0_i32_27 = arith.constant 0 : i32
    %53 = arith.cmpi eq, %arg1, %c0_i32_27 : i32
    %54 = arith.extui %53 : i1 to i32
    %c0_i32_28 = arith.constant 0 : i32
    %55 = arith.cmpi ne, %54, %c0_i32_28 : i32
    scf.if %55 {
      %c0_33 = arith.constant 0 : index
      %c0_34 = arith.constant 0 : index
      %63 = vector.load %arg13[%c0_33, %c0_34] : memref<8x128xf32, #tpu.memory_space<vmem>>, vector<8x128xf32>
      tpu.vector_store %arg13[%c0_33, %c0_34], %52 {strides = array<i32>} : memref<8x128xf32, #tpu.memory_space<vmem>>, vector<8x128xf32>,
    } else {
    }
    %c0_i32_29 = arith.constant 0 : i32
    %56 = arith.cmpi sgt, %arg1, %c0_i32_29 : i32
    %57 = arith.extui %56 : i1 to i32
    %c0_i32_30 = arith.constant 0 : i32
    %58 = arith.cmpi ne, %57, %c0_i32_30 : i32
    scf.if %58 {
      %c0_33 = arith.constant 0 : index
      %c0_34 = arith.constant 0 : index
      %63 = vector.load %arg13[%c0_33, %c0_34] : memref<8x128xf32, #tpu.memory_space<vmem>>, vector<8x128xf32>
      %64 = arith.addf %63, %52 : vector<8x128xf32>
      %c0_35 = arith.constant 0 : index
      %c0_36 = arith.constant 0 : index
      %65 = vector.load %arg13[%c0_35, %c0_36] : memref<8x128xf32, #tpu.memory_space<vmem>>, vector<8x128xf32>
      tpu.vector_store %arg13[%c0_35, %c0_36], %64 {strides = array<i32>} : memref<8x128xf32, #tpu.memory_space<vmem>>, vector<8x128xf32>,
    } else {
    }
    %c0_i32_31 = arith.constant 0 : i32
    %59 = arith.cmpi eq, %arg1, %c0_i32_31 : i32
    %60 = arith.andi %41, %59 : i1
    %61 = arith.extui %60 : i1 to i32
    %c0_i32_32 = arith.constant 0 : i32
    %62 = arith.cmpi ne, %61, %c0_i32_32 : i32
    scf.if %62 {
      %c0_33 = arith.constant 0 : index
      %c0_34 = arith.constant 0 : index
      %63 = vector.load %arg13[%c0_33, %c0_34] : memref<8x128xf32, #tpu.memory_space<vmem>>, vector<8x128xf32>
      %c0_35 = arith.constant 0 : index
      %c0_36 = arith.constant 0 : index
      %64 = vector.load %arg11[%c0_35, %c0_36] : memref<8x128xf32, #tpu.memory_space<vmem>>, vector<8x128xf32>
      tpu.vector_store %arg11[%c0_35, %c0_36], %63 {strides = array<i32>} : memref<8x128xf32, #tpu.memory_space<vmem>>, vector<8x128xf32>,
    } else {
    }
    return
  }
  func.func @transform_0(%arg0: i32, %arg1: i32) -> (i32, i32) {
    %c0_i32 = arith.constant 0 : i32
    %c0_i32_0 = arith.constant 0 : i32
    return %arg1, %c0_i32 : i32, i32
  }
  func.func @transform_1(%arg0: i32, %arg1: i32) -> (i32, i32) {
    %c0_i32 = arith.constant 0 : i32
    %c0_i32_0 = arith.constant 0 : i32
    return %c0_i32, %arg1 : i32, i32
  }
  func.func @transform_2(%arg0: i32, %arg1: i32) -> (i32, i32) {
    %c0_i32 = arith.constant 0 : i32
    %c0_i32_0 = arith.constant 0 : i32
    return %c0_i32, %arg1 : i32, i32
  }
  func.func @transform_3(%arg0: i32, %arg1: i32) -> (i32, i32) {
    %c0_i32 = arith.constant 0 : i32
    %c0_i32_0 = arith.constant 0 : i32
    %c0_i32_1 = arith.constant 0 : i32
    return %c0_i32, %c0_i32_0 : i32, i32
  }
  func.func @transform_4(%arg0: i32, %arg1: i32) -> (i32, i32) {
    %c0_i32 = arith.constant 0 : i32
    %c0_i32_0 = arith.constant 0 : i32
    %c0_i32_1 = arith.constant 0 : i32
    return %c0_i32, %c0_i32_0 : i32, i32
  }
  func.func @transform_5(%arg0: i32, %arg1: i32) -> (i32, i32) {
    %c0_i32 = arith.constant 0 : i32
    %c0_i32_0 = arith.constant 0 : i32
    %c0_i32_1 = arith.constant 0 : i32
    return %c0_i32, %c0_i32_0 : i32, i32
  }
  func.func @transform_6(%arg0: i32, %arg1: i32) -> (i32, i32) {
    %c0_i32 = arith.constant 0 : i32
    %c0_i32_0 = arith.constant 0 : i32
    %c0_i32_1 = arith.constant 0 : i32
    return %c0_i32, %c0_i32_0 : i32, i32
  }
  func.func @transform_7(%arg0: i32, %arg1: i32) -> (i32, i32) {
    %c0_i32 = arith.constant 0 : i32
    %c0_i32_0 = arith.constant 0 : i32
    %c0_i32_1 = arith.constant 0 : i32
    return %c0_i32, %c0_i32_0 : i32, i32
  }
  func.func @transform_8(%arg0: i32, %arg1: i32) -> (i32, i32) {
    %c0_i32 = arith.constant 0 : i32
    %c0_i32_0 = arith.constant 0 : i32
    %c0_i32_1 = arith.constant 0 : i32
    return %c0_i32, %c0_i32_0 : i32, i32
  }
  func.func @transform_9(%arg0: i32, %arg1: i32) -> (i32, i32) {
    %c0_i32 = arith.constant 0 : i32
    %c0_i32_0 = arith.constant 0 : i32
    %c0_i32_1 = arith.constant 0 : i32
    return %c0_i32, %c0_i32_0 : i32, i32
  }
}

module attributes {stable_mosaic.version = 11 : i64} {
  func.func @_node_final_kernel(%arg0: i32, %arg1: memref<8x16xf32, #tpu.memory_space<vmem>>, %arg2: memref<8x128xf32, #tpu.memory_space<vmem>>, %arg3: memref<16x128xf32, #tpu.memory_space<vmem>>, %arg4: memref<128x128xf32, #tpu.memory_space<vmem>>, %arg5: memref<1x128xf32, #tpu.memory_space<vmem>>, %arg6: memref<1x128xf32, #tpu.memory_space<vmem>>, %arg7: memref<1x128xf32, #tpu.memory_space<vmem>>, %arg8: memref<8x128xf32, #tpu.memory_space<vmem>>) attributes {dimension_semantics = [#tpu.dimension_semantics<parallel>], iteration_bounds = array<i64: 1>, scalar_prefetch = 0 : i64, scratch_operands = 0 : i64, tpu.core_type = #tpu.core_type<tc>, window_params = [{transform_indices = @transform_0, window_bounds = array<i64: 8, 16>}, {transform_indices = @transform_1, window_bounds = array<i64: 8, 128>}, {pipeline_mode = #tpu.pipeline_mode<synchronous>, transform_indices = @transform_2, window_bounds = array<i64: 16, 128>}, {pipeline_mode = #tpu.pipeline_mode<synchronous>, transform_indices = @transform_3, window_bounds = array<i64: 128, 128>}, {pipeline_mode = #tpu.pipeline_mode<synchronous>, transform_indices = @transform_4, window_bounds = array<i64: 1, 128>}, {pipeline_mode = #tpu.pipeline_mode<synchronous>, transform_indices = @transform_5, window_bounds = array<i64: 1, 128>}, {pipeline_mode = #tpu.pipeline_mode<synchronous>, transform_indices = @transform_6, window_bounds = array<i64: 1, 128>}, {transform_indices = @transform_7, window_bounds = array<i64: 8, 128>}]} {
    %c0 = arith.constant 0 : index
    %c0_0 = arith.constant 0 : index
    %0 = vector.load %arg1[%c0, %c0_0] : memref<8x16xf32, #tpu.memory_space<vmem>>, vector<8x16xf32>
    %c0_1 = arith.constant 0 : index
    %c0_2 = arith.constant 0 : index
    %1 = vector.load %arg3[%c0_1, %c0_2] : memref<16x128xf32, #tpu.memory_space<vmem>>, vector<16x128xf32>
    %cst = arith.constant dense<0.000000e+00> : vector<8x128xf32>
    %2 = tpu.matmul %0, %1, %cst {dimension_numbers = #tpu.dot_dimension_numbers<[1], [0], [0], [1], [0, 0, 1, 1], [], []>} : vector<8x16xf32>, vector<16x128xf32>, vector<8x128xf32> -> vector<8x128xf32>
    %c0_3 = arith.constant 0 : index
    %c0_4 = arith.constant 0 : index
    %3 = vector.load %arg2[%c0_3, %c0_4] : memref<8x128xf32, #tpu.memory_space<vmem>>, vector<8x128xf32>
    %c0_5 = arith.constant 0 : index
    %c0_6 = arith.constant 0 : index
    %4 = vector.load %arg4[%c0_5, %c0_6] : memref<128x128xf32, #tpu.memory_space<vmem>>, vector<128x128xf32>
    %cst_7 = arith.constant dense<0.000000e+00> : vector<8x128xf32>
    %5 = tpu.matmul %3, %4, %cst_7 {dimension_numbers = #tpu.dot_dimension_numbers<[1], [0], [0], [1], [0, 0, 1, 1], [], []>} : vector<8x128xf32>, vector<128x128xf32>, vector<8x128xf32> -> vector<8x128xf32>
    %6 = arith.addf %2, %5 : vector<8x128xf32>
    %c0_8 = arith.constant 0 : index
    %c0_9 = arith.constant 0 : index
    %7 = vector.load %arg5[%c0_8, %c0_9] : memref<1x128xf32, #tpu.memory_space<vmem>>, vector<1x128xf32>
    %8 = vector.broadcast %7 : vector<1x128xf32> to vector<8x128xf32>
    %9 = arith.addf %6, %8 : vector<8x128xf32>
    %cst_10 = arith.constant 0.000000e+00 : f32
    %10 = vector.broadcast %cst_10 : f32 to vector<8x128xf32>
    %11 = arith.maximumf %9, %10 : vector<8x128xf32>
    %12 = tpu.iota {dimensions = array<i32: 1>} : vector<8x128xi32>
    %c32_i32 = arith.constant 32 : i32
    %13 = vector.broadcast %c32_i32 : i32 to vector<8x128xi32>
    %14 = arith.cmpi slt, %12, %13 : vector<8x128xi32>
    %cst_11 = arith.constant dense<0.000000e+00> : vector<8xf32>
    %15 = vector.multi_reduction <add>, %11, %cst_11 [1] : vector<8x128xf32> to vector<8xf32>
    %16 = vector.shape_cast %15 : vector<8xf32> to vector<8x1xf32>
    %cst_12 = arith.constant 3.125000e-02 : f32
    %17 = vector.broadcast %cst_12 : f32 to vector<8x1xf32>
    %18 = arith.mulf %16, %17 : vector<8x1xf32>
    %19 = vector.broadcast %18 : vector<8x1xf32> to vector<8x128xf32>
    %20 = arith.subf %11, %19 : vector<8x128xf32>
    %cst_13 = arith.constant 0.000000e+00 : f32
    %21 = vector.broadcast %cst_13 : f32 to vector<8x128xf32>
    %22 = arith.select %14, %20, %21 : vector<8x128xi1>, vector<8x128xf32>
    %23 = arith.mulf %22, %22 : vector<8x128xf32>
    %cst_14 = arith.constant dense<0.000000e+00> : vector<8xf32>
    %24 = vector.multi_reduction <add>, %23, %cst_14 [1] : vector<8x128xf32> to vector<8xf32>
    %25 = vector.shape_cast %24 : vector<8xf32> to vector<8x1xf32>
    %cst_15 = arith.constant 3.125000e-02 : f32
    %26 = vector.broadcast %cst_15 : f32 to vector<8x1xf32>
    %27 = arith.mulf %25, %26 : vector<8x1xf32>
    %cst_16 = arith.constant 9.99999974E-6 : f32
    %28 = vector.broadcast %cst_16 : f32 to vector<8x1xf32>
    %29 = arith.addf %27, %28 : vector<8x1xf32>
    %30 = math.rsqrt %29 : vector<8x1xf32>
    %31 = vector.broadcast %30 : vector<8x1xf32> to vector<8x128xf32>
    %32 = arith.mulf %22, %31 : vector<8x128xf32>
    %c0_17 = arith.constant 0 : index
    %c0_18 = arith.constant 0 : index
    %33 = vector.load %arg6[%c0_17, %c0_18] : memref<1x128xf32, #tpu.memory_space<vmem>>, vector<1x128xf32>
    %34 = vector.broadcast %33 : vector<1x128xf32> to vector<8x128xf32>
    %35 = arith.mulf %32, %34 : vector<8x128xf32>
    %c0_19 = arith.constant 0 : index
    %c0_20 = arith.constant 0 : index
    %36 = vector.load %arg7[%c0_19, %c0_20] : memref<1x128xf32, #tpu.memory_space<vmem>>, vector<1x128xf32>
    %37 = vector.broadcast %36 : vector<1x128xf32> to vector<8x128xf32>
    %38 = arith.addf %35, %37 : vector<8x128xf32>
    %cst_21 = arith.constant 0.000000e+00 : f32
    %39 = vector.broadcast %cst_21 : f32 to vector<8x128xf32>
    %40 = arith.maximumf %38, %39 : vector<8x128xf32>
    %c0_22 = arith.constant 0 : index
    %c0_23 = arith.constant 0 : index
    %41 = vector.load %arg8[%c0_22, %c0_23] : memref<8x128xf32, #tpu.memory_space<vmem>>, vector<8x128xf32>
    tpu.vector_store %arg8[%c0_22, %c0_23], %40 {strides = array<i32>} : memref<8x128xf32, #tpu.memory_space<vmem>>, vector<8x128xf32>,
    return
  }
  func.func @transform_0(%arg0: i32) -> (i32, i32) {
    %c0_i32 = arith.constant 0 : i32
    %c0_i32_0 = arith.constant 0 : i32
    return %arg0, %c0_i32 : i32, i32
  }
  func.func @transform_1(%arg0: i32) -> (i32, i32) {
    %c0_i32 = arith.constant 0 : i32
    %c0_i32_0 = arith.constant 0 : i32
    return %arg0, %c0_i32 : i32, i32
  }
  func.func @transform_2(%arg0: i32) -> (i32, i32) {
    %c0_i32 = arith.constant 0 : i32
    %c0_i32_0 = arith.constant 0 : i32
    %c0_i32_1 = arith.constant 0 : i32
    return %c0_i32, %c0_i32_0 : i32, i32
  }
  func.func @transform_3(%arg0: i32) -> (i32, i32) {
    %c0_i32 = arith.constant 0 : i32
    %c0_i32_0 = arith.constant 0 : i32
    %c0_i32_1 = arith.constant 0 : i32
    return %c0_i32, %c0_i32_0 : i32, i32
  }
  func.func @transform_4(%arg0: i32) -> (i32, i32) {
    %c0_i32 = arith.constant 0 : i32
    %c0_i32_0 = arith.constant 0 : i32
    %c0_i32_1 = arith.constant 0 : i32
    return %c0_i32, %c0_i32_0 : i32, i32
  }
  func.func @transform_5(%arg0: i32) -> (i32, i32) {
    %c0_i32 = arith.constant 0 : i32
    %c0_i32_0 = arith.constant 0 : i32
    %c0_i32_1 = arith.constant 0 : i32
    return %c0_i32, %c0_i32_0 : i32, i32
  }
  func.func @transform_6(%arg0: i32) -> (i32, i32) {
    %c0_i32 = arith.constant 0 : i32
    %c0_i32_0 = arith.constant 0 : i32
    %c0_i32_1 = arith.constant 0 : i32
    return %c0_i32, %c0_i32_0 : i32, i32
  }
  func.func @transform_7(%arg0: i32) -> (i32, i32) {
    %c0_i32 = arith.constant 0 : i32
    %c0_i32_0 = arith.constant 0 : i32
    return %arg0, %c0_i32 : i32, i32
  }
}

</mosaic_0001>

<llo_original>
// kernel: directed_message_passing.3
$region0: #{directed_message_passing.3}
  #allocation0 [shape = 'u32[]', space=smem, size = 0x4, offset = 0x4, fixed_abs, tag = 'smem constant byte address 0x4 - core index']
  #allocation1 [shape = 'u32[72,128]{1,0:T(1,128)}', space=vmem, size = 0x9000, scoped, tag = 'internal scratch']
  %s0 = inlined_call_operand.vmem [shape: s32[128,1], index: 0, kind: input, shape index: {}]
  %s1 = inlined_call_operand.vmem [shape: s32[1,128], index: 1, kind: input, shape index: {}]
  %s2 = inlined_call_operand.vmem [shape: bf16[8,16], index: 2, kind: input, shape index: {}]
  %s3 = inlined_call_operand.vmem [shape: f32[128,8], index: 3, kind: input, shape index: {}]
  %s4 = inlined_call_operand.vmem [shape: f32[16,128], index: 4, kind: input, shape index: {}]
  %s5 = inlined_call_operand.vmem [shape: f32[8,128], index: 5, kind: input, shape index: {}]
  %s6 = inlined_call_operand.vmem [shape: f32[1,128], index: 6, kind: input, shape index: {}]
  %s7 = inlined_call_operand.vmem [shape: f32[128,128], index: 7, kind: output, shape index: {0}]
  %s8 = inlined_call_operand.vmem [shape: f32[8,128], index: 8, kind: output, shape index: {1}]
  %9 = xla_tuple %s7, %s8
  %s10 = sld [smem:[#allocation0]]
  $region54: #{directed_message_passing.3} parent=0
    _
  %s12 = ssub.s32 1, %s10
  %s13 = scalar_select 0, %s12, %s10
  // Predicated region
  $region2: #{directed_message_passing.3} parent=0 // pred_check
    _
  $region3: #{directed_message_passing.3} parent=0 // pred_check_branch
    %15 = sbr.rel (0) target = $region5
  $region4: #{directed_message_passing.3} parent=0 // pred_region
    _
  $region5: #{directed_message_passing.3} parent=0 // pred_fallthru
    _
  // Predicated region
  $region6: #{directed_message_passing.3} parent=0 // pred_check
    _
  $region7: #{directed_message_passing.3} parent=0 // pred_check_branch
    %17 = sbr.rel (0) target = $region9
  $region8: #{directed_message_passing.3} parent=0 // pred_region
    _
  $region9: #{directed_message_passing.3} parent=0 // pred_fallthru
    _
  // Predicated region
  $region10: #{directed_message_passing.3} parent=0 // pred_check
    _
  $region11: #{directed_message_passing.3} parent=0 // pred_check_branch
    %19 = sbr.rel (0) target = $region13
  $region12: #{directed_message_passing.3} parent=0 // pred_region
    _
  $region13: #{directed_message_passing.3} parent=0 // pred_fallthru
    _
  // Predicated region
  $region14: #{directed_message_passing.3} parent=0 // pred_check
    _
  $region15: #{directed_message_passing.3} parent=0 // pred_check_branch
    %21 = sbr.rel (0) target = $region17
  $region16: #{directed_message_passing.3} parent=0 // pred_region
    _
  $region17: #{directed_message_passing.3} parent=0 // pred_fallthru
    _
  // Predicated region
  $region18: #{directed_message_passing.3} parent=0 // pred_check
    _
  $region19: #{directed_message_passing.3} parent=0 // pred_check_branch
    %23 = sbr.rel (0) target = $region21
  $region20: #{directed_message_passing.3} parent=0 // pred_region
    _
  $region21: #{directed_message_passing.3} parent=0 // pred_fallthru
    _
  // Predicated region
  $region22: #{directed_message_passing.3} parent=0 // pred_check
    _
  $region23: #{directed_message_passing.3} parent=0 // pred_check_branch
    %25 = sbr.rel (0) target = $region25
  $region24: #{directed_message_passing.3} parent=0 // pred_region
    _
  $region25: #{directed_message_passing.3} parent=0 // pred_fallthru
    _
  // Predicated region
  $region26: #{directed_message_passing.3} parent=0 // pred_check
    _
  $region27: #{directed_message_passing.3} parent=0 // pred_check_branch
    %27 = sbr.rel (0) target = $region29
  $region28: #{directed_message_passing.3} parent=0 // pred_region
    _
  $region29: #{directed_message_passing.3} parent=0 // pred_fallthru
    _
  %v29 = vlaneseq
  %v30 = vand.u32 %v29, 127
  %v31 = vld [vmem:[%s0] sm:$0xff]
  %v32 = vld [vmem:[%s0 + $0x8] sm:$0xff]
  %v33 = vld [vmem:[%s0 + $0x10] sm:$0xff]
  %v34 = vld [vmem:[%s0 + $0x18] sm:$0xff]
  %v35 = vld [vmem:[%s0 + $0x20] sm:$0xff]
  %v36 = vld [vmem:[%s0 + $0x28] sm:$0xff]
  %v37 = vld [vmem:[%s0 + $0x30] sm:$0xff]
  %v38 = vld [vmem:[%s0 + $0x38] sm:$0xff]
  %v39 = vld [vmem:[%s0 + $0x40] sm:$0xff]
  %v40 = vld [vmem:[%s0 + $0x48] sm:$0xff]
  %v41 = vld [vmem:[%s0 + $0x50] sm:$0xff]
  %v42 = vld [vmem:[%s0 + $0x58] sm:$0xff]
  %v43 = vld [vmem:[%s0 + $0x60] sm:$0xff]
  %v44 = vld [vmem:[%s0 + $0x68] sm:$0xff]
  %v45 = vld [vmem:[%s0 + $0x70] sm:$0xff]
  %v46 = vld [vmem:[%s0 + $0x78] sm:$0xff]
  %47 = vset.pattern.permute.xlu0 0
  %48 = vperm.xlu0 %47, %v31
  %v49 = vpop.permute.xlu0 %48
  %50 = vset.pattern.permute.xlu0 0
  %51 = vperm.xlu0 %50, %v32
  %v52 = vpop.permute.xlu0 %51
  %53 = vset.pattern.permute.xlu0 0
  %54 = vperm.xlu0 %53, %v33
  %v55 = vpop.permute.xlu0 %54
  %56 = vset.pattern.permute.xlu0 0
  %57 = vperm.xlu0 %56, %v34
  %v58 = vpop.permute.xlu0 %57
  %59 = vset.pattern.permute.xlu0 0
  %60 = vperm.xlu0 %59, %v35
  %v61 = vpop.permute.xlu0 %60
  %62 = vset.pattern.permute.xlu0 0
  %63 = vperm.xlu0 %62, %v36
  %v64 = vpop.permute.xlu0 %63
  %65 = vset.pattern.permute.xlu0 0
  %66 = vperm.xlu0 %65, %v37
  %v67 = vpop.permute.xlu0 %66
  %68 = vset.pattern.permute.xlu0 0
  %69 = vperm.xlu0 %68, %v38
  %v70 = vpop.permute.xlu0 %69
  %71 = vset.pattern.permute.xlu0 0
  %72 = vperm.xlu0 %71, %v39
  %v73 = vpop.permute.xlu0 %72
  %74 = vset.pattern.permute.xlu0 0
  %75 = vperm.xlu0 %74, %v40
  %v76 = vpop.permute.xlu0 %75
  %77 = vset.pattern.permute.xlu0 0
  %78 = vperm.xlu0 %77, %v41
  %v79 = vpop.permute.xlu0 %78
  %80 = vset.pattern.permute.xlu0 0
  %81 = vperm.xlu0 %80, %v42
  %v82 = vpop.permute.xlu0 %81
  %83 = vset.pattern.permute.xlu0 0
  %84 = vperm.xlu0 %83, %v43
  %v85 = vpop.permute.xlu0 %84
  %86 = vset.pattern.permute.xlu0 0
  %87 = vperm.xlu0 %86, %v44
  %v88 = vpop.permute.xlu0 %87
  %89 = vset.pattern.permute.xlu0 0
  %90 = vperm.xlu0 %89, %v45
  %v91 = vpop.permute.xlu0 %90
  %92 = vset.pattern.permute.xlu0 0
  %93 = vperm.xlu0 %92, %v46
  %v94 = vpop.permute.xlu0 %93
  %vm95 = vcmp.eq.s32.totalorder %v30, %v49
  %vm96 = vcmp.eq.s32.totalorder %v30, %v52
  %vm97 = vcmp.eq.s32.totalorder %v30, %v55
  %vm98 = vcmp.eq.s32.totalorder %v30, %v58
  %vm99 = vcmp.eq.s32.totalorder %v30, %v61
  %vm100 = vcmp.eq.s32.totalorder %v30, %v64
  %vm101 = vcmp.eq.s32.totalorder %v30, %v67
  %vm102 = vcmp.eq.s32.totalorder %v30, %v70
  %vm103 = vcmp.eq.s32.totalorder %v30, %v73
  %vm104 = vcmp.eq.s32.totalorder %v30, %v76
  %vm105 = vcmp.eq.s32.totalorder %v30, %v79
  %vm106 = vcmp.eq.s32.totalorder %v30, %v82
  %vm107 = vcmp.eq.s32.totalorder %v30, %v85
  %vm108 = vcmp.eq.s32.totalorder %v30, %v88
  %vm109 = vcmp.eq.s32.totalorder %v30, %v91
  %vm110 = vcmp.eq.s32.totalorder %v30, %v94
  %v111 = vsel %vm95, 1, 0
  %v112 = vsel %vm96, 1, 0
  %v113 = vsel %vm97, 1, 0
  %v114 = vsel %vm98, 1, 0
  %v115 = vsel %vm99, 1, 0
  %v116 = vsel %vm100, 1, 0
  %v117 = vsel %vm101, 1, 0
  %v118 = vsel %vm102, 1, 0
  %v119 = vsel %vm103, 1, 0
  %v120 = vsel %vm104, 1, 0
  %v121 = vsel %vm105, 1, 0
  %v122 = vsel %vm106, 1, 0
  %v123 = vsel %vm107, 1, 0
  %v124 = vsel %vm108, 1, 0
  %v125 = vsel %vm109, 1, 0
  %v126 = vsel %vm110, 1, 0
  %v127 = vcvt.s32.f32 %v111
  %v128 = vcvt.s32.f32 %v112
  %v129 = vcvt.s32.f32 %v113
  %v130 = vcvt.s32.f32 %v114
  %v131 = vcvt.s32.f32 %v115
  %v132 = vcvt.s32.f32 %v116
  %v133 = vcvt.s32.f32 %v117
  %v134 = vcvt.s32.f32 %v118
  %v135 = vcvt.s32.f32 %v119
  %v136 = vcvt.s32.f32 %v120
  %v137 = vcvt.s32.f32 %v121
  %v138 = vcvt.s32.f32 %v122
  %v139 = vcvt.s32.f32 %v123
  %v140 = vcvt.s32.f32 %v124
  %v141 = vcvt.s32.f32 %v125
  %v142 = vcvt.s32.f32 %v126
  %v143 = vpack.c.bf16 %v128, %v127
  %v144 = vpack.c.bf16 %v130, %v129
  %v145 = vpack.c.bf16 %v132, %v131
  %v146 = vpack.c.bf16 %v134, %v133
  %v147 = vpack.c.bf16 %v136, %v135
  %v148 = vpack.c.bf16 %v138, %v137
  %v149 = vpack.c.bf16 %v140, %v139
  %v150 = vpack.c.bf16 %v142, %v141
  %v151 = vld [vmem:[%s2] sm:$0xf]
  %vm152 = vcmask 64512
  %v154 = vsel %vm152, %v143, 0
  %v157 = vsel %vm152, %v144, 0
  %v160 = vsel %vm152, %v145, 0
  %v163 = vsel %vm152, %v146, 0
  %v166 = vsel %vm152, %v147, 0
  %v169 = vsel %vm152, %v148, 0
  %v172 = vsel %vm152, %v149, 0
  %v175 = vsel %vm152, %v150, 0
  %vm177 = vcmask 1043456
  %v179 = vsel %vm177, %v151, 0
  %181 = vmatpush.bf16.msra.mxu0 0
  %182 = vmatpush.bf16.msra.mxu0 0
  %183 = vmatpush.bf16.msra.mxu0 0
  %184 = vmatpush.bf16.msra.mxu0 0
  %185 = vmatpush.bf16.msra.mxu0 0
  %186 = vmatpush.bf16.msra.mxu0 0
  %187 = vmatpush.bf16.msra.mxu0 0
  %188 = vmatpush.bf16.msra.mxu0 %v179
  %189 = vmatmul.bf16.gmra.mxu0 %v154
  %v190 = vpop.f32.mrf.mxu0
  %v191 = vadd.f32 0.0, %v190
  %v192 = vpop.f32.mrf.mxu0
  %v193 = vadd.f32 0.0, %v192
  %194 = vmatmul.bf16.gmra.mxu0 %v157
  %v195 = vpop.f32.mrf.mxu0
  %v196 = vadd.f32 0.0, %v195
  %v197 = vpop.f32.mrf.mxu0
  %v198 = vadd.f32 0.0, %v197
  %199 = vmatmul.bf16.gmra.mxu0 %v160
  %v200 = vpop.f32.mrf.mxu0
  %v201 = vadd.f32 0.0, %v200
  %v202 = vpop.f32.mrf.mxu0
  %v203 = vadd.f32 0.0, %v202
  %204 = vmatmul.bf16.gmra.mxu0 %v163
  %v205 = vpop.f32.mrf.mxu0
  %v206 = vadd.f32 0.0, %v205
  %v207 = vpop.f32.mrf.mxu0
  %v208 = vadd.f32 0.0, %v207
  %209 = vmatmul.bf16.gmra.mxu0 %v166
  %v210 = vpop.f32.mrf.mxu0
  %v211 = vadd.f32 0.0, %v210
  %v212 = vpop.f32.mrf.mxu0
  %v213 = vadd.f32 0.0, %v212
  %214 = vmatmul.bf16.gmra.mxu0 %v169
  %v215 = vpop.f32.mrf.mxu0
  %v216 = vadd.f32 0.0, %v215
  %v217 = vpop.f32.mrf.mxu0
  %v218 = vadd.f32 0.0, %v217
  %219 = vmatmul.bf16.gmra.mxu0 %v172
  %v220 = vpop.f32.mrf.mxu0
  %v221 = vadd.f32 0.0, %v220
  %v222 = vpop.f32.mrf.mxu0
  %v223 = vadd.f32 0.0, %v222
  %224 = vmatmul.bf16.gmra.mxu0 %v175
  %v225 = vpop.f32.mrf.mxu0
  %v226 = vadd.f32 0.0, %v225
  %v227 = vpop.f32.mrf.mxu0
  %v228 = vadd.f32 0.0, %v227
  %229 = vdwg.mxu0
  %v230 = vld [vmem:[%s4] sm:$0xff]
  %v231 = vld [vmem:[%s4 + $0x8] sm:$0xff]
  %v232 = vld [vmem:[%s3] sm:$0xff]
  %v233 = vld [vmem:[%s3 + $0x8] sm:$0xff]
  %v234 = vld [vmem:[%s3 + $0x10] sm:$0xff]
  %v235 = vld [vmem:[%s3 + $0x18] sm:$0xff]
  %v236 = vld [vmem:[%s3 + $0x20] sm:$0xff]
  %v237 = vld [vmem:[%s3 + $0x28] sm:$0xff]
  %v238 = vld [vmem:[%s3 + $0x30] sm:$0xff]
  %v239 = vld [vmem:[%s3 + $0x38] sm:$0xff]
  %v240 = vld [vmem:[%s3 + $0x40] sm:$0xff]
  %v241 = vld [vmem:[%s3 + $0x48] sm:$0xff]
  %v242 = vld [vmem:[%s3 + $0x50] sm:$0xff]
  %v243 = vld [vmem:[%s3 + $0x58] sm:$0xff]
  %v244 = vld [vmem:[%s3 + $0x60] sm:$0xff]
  %v245 = vld [vmem:[%s3 + $0x68] sm:$0xff]
  %v246 = vld [vmem:[%s3 + $0x70] sm:$0xff]
  %v247 = vld [vmem:[%s3 + $0x78] sm:$0xff]
  %v248 = vld [vmem:[%s5] sm:$0xff]
  %v250 = vsel %vm152, %v232, 0
  %v253 = vsel %vm152, %v233, 0
  %v256 = vsel %vm152, %v234, 0
  %v259 = vsel %vm152, %v235, 0
  %v262 = vsel %vm152, %v236, 0
  %v265 = vsel %vm152, %v237, 0
  %v268 = vsel %vm152, %v238, 0
  %v271 = vsel %vm152, %v239, 0
  %v274 = vsel %vm152, %v240, 0
  %v277 = vsel %vm152, %v241, 0
  %v280 = vsel %vm152, %v242, 0
  %v283 = vsel %vm152, %v243, 0
  %v286 = vsel %vm152, %v244, 0
  %v289 = vsel %vm152, %v245, 0
  %v292 = vsel %vm152, %v246, 0
  %v295 = vsel %vm152, %v247, 0
  %297 = vmatpush.msra.mxu0 0.0
  %298 = vmatpush.msra.mxu0 0.0
  %299 = vmatpush.msra.mxu0 0.0
  %300 = vmatpush.msra.mxu0 0.0
  %301 = vmatpush.msra.mxu0 0.0
  %302 = vmatpush.msra.mxu0 0.0
  %303 = vmatpush.msra.mxu0 0.0
  %304 = vmatpush.msra.mxu0 0.0
  %305 = vmatpush.msra.mxu0 0.0
  %306 = vmatpush.msra.mxu0 0.0
  %307 = vmatpush.msra.mxu0 0.0
  %308 = vmatpush.msra.mxu0 0.0
  %309 = vmatpush.msra.mxu0 0.0
  %310 = vmatpush.msra.mxu0 0.0
  %311 = vmatpush.msra.mxu0 0.0
  %312 = vmatpush.msra.mxu0 %v248
  %313 = vmatmul.f32.gmra.mxu0 %v250
  %v314 = vpop.f32.mrf.mxu0
  %v315 = vadd.f32 0.0, %v314
  %316 = vmatmul.f32.gmra.mxu0 %v253
  %v317 = vpop.f32.mrf.mxu0
  %v318 = vadd.f32 0.0, %v317
  %319 = vmatmul.f32.gmra.mxu0 %v256
  %v320 = vpop.f32.mrf.mxu0
  %v321 = vadd.f32 0.0, %v320
  %322 = vmatmul.f32.gmra.mxu0 %v259
  %v323 = vpop.f32.mrf.mxu0
  %v324 = vadd.f32 0.0, %v323
  %325 = vmatmul.f32.gmra.mxu0 %v262
  %v326 = vpop.f32.mrf.mxu0
  %v327 = vadd.f32 0.0, %v326
  %328 = vmatmul.f32.gmra.mxu0 %v265
  %v329 = vpop.f32.mrf.mxu0
  %v330 = vadd.f32 0.0, %v329
  %331 = vmatmul.f32.gmra.mxu0 %v268
  %v332 = vpop.f32.mrf.mxu0
  %v333 = vadd.f32 0.0, %v332
  %334 = vmatmul.f32.gmra.mxu0 %v271
  %v335 = vpop.f32.mrf.mxu0
  %v336 = vadd.f32 0.0, %v335
  %337 = vmatmul.f32.gmra.mxu0 %v274
  %v338 = vpop.f32.mrf.mxu0
  %v339 = vadd.f32 0.0, %v338
  %340 = vmatmul.f32.gmra.mxu0 %v277
  %v341 = vpop.f32.mrf.mxu0
  %v342 = vadd.f32 0.0, %v341
  %343 = vmatmul.f32.gmra.mxu0 %v280
  %v344 = vpop.f32.mrf.mxu0
  %v345 = vadd.f32 0.0, %v344
  %346 = vmatmul.f32.gmra.mxu0 %v283
  %v347 = vpop.f32.mrf.mxu0
  %v348 = vadd.f32 0.0, %v347
  %349 = vmatmul.f32.gmra.mxu0 %v286
  %v350 = vpop.f32.mrf.mxu0
  %v351 = vadd.f32 0.0, %v350
  %352 = vmatmul.f32.gmra.mxu0 %v289
  %v353 = vpop.f32.mrf.mxu0
  %v354 = vadd.f32 0.0, %v353
  %355 = vmatmul.f32.gmra.mxu0 %v292
  %v356 = vpop.f32.mrf.mxu0
  %v357 = vadd.f32 0.0, %v356
  %358 = vmatmul.f32.gmra.mxu0 %v295
  %v359 = vpop.f32.mrf.mxu0
  %v360 = vadd.f32 0.0, %v359
  %361 = vdwg.mxu0
  %vm362 = vcmask 130048
  %v364 = vsel %vm362, %v191, 0
  %v367 = vsel %vm362, %v193, 0
  %v370 = vsel %vm362, %v196, 0
  %v373 = vsel %vm362, %v198, 0
  %v376 = vsel %vm362, %v201, 0
  %v379 = vsel %vm362, %v203, 0
  %v382 = vsel %vm362, %v206, 0
  %v385 = vsel %vm362, %v208, 0
  %v388 = vsel %vm362, %v211, 0
  %v391 = vsel %vm362, %v213, 0
  %v394 = vsel %vm362, %v216, 0
  %v397 = vsel %vm362, %v218, 0
  %v400 = vsel %vm362, %v221, 0
  %v403 = vsel %vm362, %v223, 0
  %v406 = vsel %vm362, %v226, 0
  %v409 = vsel %vm362, %v228, 0
  %411 = vmatpush.msra.mxu0 0.0
  %412 = vmatpush.msra.mxu0 0.0
  %413 = vmatpush.msra.mxu0 0.0
  %414 = vmatpush.msra.mxu0 0.0
  %415 = vmatpush.msra.mxu0 0.0
  %416 = vmatpush.msra.mxu0 0.0
  %417 = vmatpush.msra.mxu0 0.0
  %418 = vmatpush.msra.mxu0 0.0
  %419 = vmatpush.msra.mxu0 0.0
  %420 = vmatpush.msra.mxu0 0.0
  %421 = vmatpush.msra.mxu0 0.0
  %422 = vmatpush.msra.mxu0 0.0
  %423 = vmatpush.msra.mxu0 0.0
  %424 = vmatpush.msra.mxu0 0.0
  %425 = vmatpush.msra.mxu0 %v231
  %426 = vmatpush.msra.mxu0 %v230
  %427 = vmatmul.f32.gmra.mxu0 %v364
  %v428 = vpop.f32.mrf.mxu0
  %v429 = vadd.f32 %v315, %v428
  %430 = vmatmul.f32.gmra.mxu0 %v367
  %v431 = vpop.f32.mrf.mxu0
  %v432 = vadd.f32 %v318, %v431
  %433 = vmatmul.f32.gmra.mxu0 %v370
  %v434 = vpop.f32.mrf.mxu0
  %v435 = vadd.f32 %v321, %v434
  %436 = vmatmul.f32.gmra.mxu0 %v373
  %v437 = vpop.f32.mrf.mxu0
  %v438 = vadd.f32 %v324, %v437
  %439 = vmatmul.f32.gmra.mxu0 %v376
  %v440 = vpop.f32.mrf.mxu0
  %v441 = vadd.f32 %v327, %v440
  %442 = vmatmul.f32.gmra.mxu0 %v379
  %v443 = vpop.f32.mrf.mxu0
  %v444 = vadd.f32 %v330, %v443
  %445 = vmatmul.f32.gmra.mxu0 %v382
  %v446 = vpop.f32.mrf.mxu0
  %v447 = vadd.f32 %v333, %v446
  %448 = vmatmul.f32.gmra.mxu0 %v385
  %v449 = vpop.f32.mrf.mxu0
  %v450 = vadd.f32 %v336, %v449
  %451 = vmatmul.f32.gmra.mxu0 %v388
  %v452 = vpop.f32.mrf.mxu0
  %v453 = vadd.f32 %v339, %v452
  %454 = vmatmul.f32.gmra.mxu0 %v391
  %v455 = vpop.f32.mrf.mxu0
  %v456 = vadd.f32 %v342, %v455
  %457 = vmatmul.f32.gmra.mxu0 %v394
  %v458 = vpop.f32.mrf.mxu0
  %v459 = vadd.f32 %v345, %v458
  %460 = vmatmul.f32.gmra.mxu0 %v397
  %v461 = vpop.f32.mrf.mxu0
  %v462 = vadd.f32 %v348, %v461
  %463 = vmatmul.f32.gmra.mxu0 %v400
  %v464 = vpop.f32.mrf.mxu0
  %v465 = vadd.f32 %v351, %v464
  %466 = vmatmul.f32.gmra.mxu0 %v403
  %v467 = vpop.f32.mrf.mxu0
  %v468 = vadd.f32 %v354, %v467
  %469 = vmatmul.f32.gmra.mxu0 %v406
  %v470 = vpop.f32.mrf.mxu0
  %v471 = vadd.f32 %v357, %v470
  %472 = vmatmul.f32.gmra.mxu0 %v409
  %v473 = vpop.f32.mrf.mxu0
  %v474 = vadd.f32 %v360, %v473
  %475 = vdwg.mxu0
  %v476 = vld [vmem:[%s6] sm:$0x1]
  %v478 = vperm.slane %v476, 0
  %v480 = vadd.f32 %v429, %v478
  %v481 = vadd.f32 %v432, %v478
  %v482 = vadd.f32 %v435, %v478
  %v483 = vadd.f32 %v438, %v478
  %v484 = vadd.f32 %v441, %v478
  %v485 = vadd.f32 %v444, %v478
  %v486 = vadd.f32 %v447, %v478
  %v487 = vadd.f32 %v450, %v478
  %v488 = vadd.f32 %v453, %v478
  %v489 = vadd.f32 %v456, %v478
  %v490 = vadd.f32 %v459, %v478
  %v491 = vadd.f32 %v462, %v478
  %v492 = vadd.f32 %v465, %v478
  %v493 = vadd.f32 %v468, %v478
  %v494 = vadd.f32 %v471, %v478
  %v495 = vadd.f32 %v474, %v478
  %v496 = vmax.f32 %v480, 0.0
  %v497 = vmax.f32 %v481, 0.0
  %v498 = vmax.f32 %v482, 0.0
  %v499 = vmax.f32 %v483, 0.0
  %v500 = vmax.f32 %v484, 0.0
  %v501 = vmax.f32 %v485, 0.0
  %v502 = vmax.f32 %v486, 0.0
  %v503 = vmax.f32 %v487, 0.0
  %v504 = vmax.f32 %v488, 0.0
  %v505 = vmax.f32 %v489, 0.0
  %v506 = vmax.f32 %v490, 0.0
  %v507 = vmax.f32 %v491, 0.0
  %v508 = vmax.f32 %v492, 0.0
  %v509 = vmax.f32 %v493, 0.0
  %v510 = vmax.f32 %v494, 0.0
  %v511 = vmax.f32 %v495, 0.0
  %512 = vst [vmem:[%s7] sm:$0xff] %v496
  %513 = vst [vmem:[%s7 + $0x8] sm:$0xff] %v497
  %514 = vst [vmem:[%s7 + $0x10] sm:$0xff] %v498
  %515 = vst [vmem:[%s7 + $0x18] sm:$0xff] %v499
  %516 = vst [vmem:[%s7 + $0x20] sm:$0xff] %v500
  %517 = vst [vmem:[%s7 + $0x28] sm:$0xff] %v501
  %518 = vst [vmem:[%s7 + $0x30] sm:$0xff] %v502
  %519 = vst [vmem:[%s7 + $0x38] sm:$0xff] %v503
  %520 = vst [vmem:[%s7 + $0x40] sm:$0xff] %v504
  %521 = vst [vmem:[%s7 + $0x48] sm:$0xff] %v505
  %522 = vst [vmem:[%s7 + $0x50] sm:$0xff] %v506
  %523 = vst [vmem:[%s7 + $0x58] sm:$0xff] %v507
  %524 = vst [vmem:[%s7 + $0x60] sm:$0xff] %v508
  %525 = vst [vmem:[%s7 + $0x68] sm:$0xff] %v509
  %526 = vst [vmem:[%s7 + $0x70] sm:$0xff] %v510
  %527 = vst [vmem:[%s7 + $0x78] sm:$0xff] %v511
  %v528 = vlaneseq
  %v529 = vshrl.u32 %v528, 7
  %v530 = vld [vmem:[%s1] sm:$0x1]
  %v531 = vperm.slane %v530, 0
  %vm532 = vcmp.eq.s32.totalorder %v529, %v531
  %v533 = vsel %vm532, 1, 0
  %v534 = vcvt.s32.f32 %v533
  %v535 = vpack.c.bf16 %v534, %v534
  %v536 = vpack.c.bf16 %v497, %v496
  %v537 = vpack.c.bf16 %v499, %v498
  %v538 = vpack.c.bf16 %v501, %v500
  %v539 = vpack.c.bf16 %v503, %v502
  %v540 = vpack.c.bf16 %v505, %v504
  %v541 = vpack.c.bf16 %v507, %v506
  %v542 = vpack.c.bf16 %v509, %v508
  %v543 = vpack.c.bf16 %v511, %v510
  %544 = vmatpush.bf16.msra.mxu0 %v543
  %545 = vmatpush.bf16.msra.mxu0 %v542
  %546 = vmatpush.bf16.msra.mxu0 %v541
  %547 = vmatpush.bf16.msra.mxu0 %v540
  %548 = vmatpush.bf16.msra.mxu0 %v539
  %549 = vmatpush.bf16.msra.mxu0 %v538
  %550 = vmatpush.bf16.msra.mxu0 %v537
  %551 = vmatpush.bf16.msra.mxu0 %v536
  %552 = vmatmul.bf16.gmra.mxu0 %v535
  %v553 = vpop.f32.mrf.mxu0
  %v554 = vadd.f32 0.0, %v553
  %v555 = vpop.f32.mrf.mxu0
  %556 = vdwg.mxu0
  %p557 = scmp.eq.s32.totalorder 0, 0
  // Predicated region
  $region30: #{directed_message_passing.3} parent=0 // pred_check
    %p558 = pneg %p557
  $region31: #{directed_message_passing.3} parent=0 // pred_check_branch
    %560 = sbr.rel (%p558) target = $region33
  $region32: #{directed_message_passing.3} parent=0 // pred_region
    %561 = vst [vmem:[%s8] sm:$0xff] %v554
  $region33: #{directed_message_passing.3} parent=0 // pred_fallthru
    _
  %p562 = scmp.gt.s32.totalorder 0, 0
  // Predicated region
  $region34: #{directed_message_passing.3} parent=0 // pred_check
    %p563 = pneg %p562
  $region35: #{directed_message_passing.3} parent=0 // pred_check_branch
    %565 = sbr.rel (%p563) target = $region37
  $region36: #{directed_message_passing.3} parent=0 // pred_region
    %v566 = vld [vmem:[%s8] sm:$0xff]
    %v567 = vadd.f32 %v566, %v554
    %568 = vst [vmem:[%s8] sm:$0xff] %v567
  $region37: #{directed_message_passing.3} parent=0 // pred_fallthru
    _
  // Predicated region
  $region38: #{directed_message_passing.3} parent=0 // pred_check
    _
  $region39: #{directed_message_passing.3} parent=0 // pred_check_branch
    %570 = sbr.rel (0) target = $region41
  $region40: #{directed_message_passing.3} parent=0 // pred_region
    _
  $region41: #{directed_message_passing.3} parent=0 // pred_fallthru
    _
  // Predicated region
  $region42: #{directed_message_passing.3} parent=0 // pred_check
    _
  $region43: #{directed_message_passing.3} parent=0 // pred_check_branch
    %572 = sbr.rel (0) target = $region45
  $region44: #{directed_message_passing.3} parent=0 // pred_region
    _
  $region45: #{directed_message_passing.3} parent=0 // pred_fallthru
    _
  // Predicated region
  $region46: #{directed_message_passing.3} parent=0 // pred_check
    _
  $region47: #{directed_message_passing.3} parent=0 // pred_check_branch
    %574 = sbr.rel (0) target = $region49
  $region48: #{directed_message_passing.3} parent=0 // pred_region
    _
  $region49: #{directed_message_passing.3} parent=0 // pred_fallthru
    _
  // Predicated region
  $region50: #{directed_message_passing.3} parent=0 // pred_check
    _
  $region51: #{directed_message_passing.3} parent=0 // pred_check_branch
    %576 = sbr.rel (0) target = $region53
  $region52: #{directed_message_passing.3} parent=0 // pred_region
    _
  $region53: #{directed_message_passing.3} parent=0 // pred_fallthru
    _

// kernel: directed_message_passing.5
$region0: #{directed_message_passing.5}
  #allocation0 [shape = 'u32[]', space=smem, size = 0x4, offset = 0x4, fixed_abs, tag = 'smem constant byte address 0x4 - core index']
  #allocation1 [shape = 'u32[72,128]{1,0:T(1,128)}', space=vmem, size = 0x9000, scoped, tag = 'internal scratch']
  %s0 = inlined_call_operand.vmem [shape: f32[8,16], index: 0, kind: input, shape index: {}]
  %s1 = inlined_call_operand.vmem [shape: f32[8,128], index: 1, kind: input, shape index: {}]
  %s2 = inlined_call_operand.vmem [shape: f32[16,128], index: 2, kind: input, shape index: {}]
  %s3 = inlined_call_operand.vmem [shape: f32[128,128], index: 3, kind: input, shape index: {}]
  %s4 = inlined_call_operand.vmem [shape: f32[1,128], index: 4, kind: input, shape index: {}]
  %s5 = inlined_call_operand.vmem [shape: f32[1,128], index: 5, kind: input, shape index: {}]
  %s6 = inlined_call_operand.vmem [shape: f32[1,128], index: 6, kind: input, shape index: {}]
  %s7 = inlined_call_operand.hbm [shape: f32[8,128], index: 7, kind: output, shape index: {}]
  %s8 = sld [smem:[#allocation0]]
  $region38: #{directed_message_passing.5} parent=0
    _
  %s10 = ssub.s32 1, %s8
  %s11 = scalar_select 0, %s10, %s8
  $region1: #{directed_message_passing.5} parent=0
    #allocation2 [shape = 'u8[4096]{0}', space=vmem, size = 0x1000, scoped, tag = 'output window, operand 0, single buffered']
    #allocation3 [shape = 's32[1]{0}', space=sflag, size = 0x4, scoped, tag = 'scoped memory for directed_message_passing.5']
    %12 = vsyncpa [#allocation3], 0
    // Predicated region
    $region2: #{directed_message_passing.5} parent=1 // pred_check
      _
    $region3: #{directed_message_passing.5} parent=1 // pred_check_branch
      %14 = sbr.rel (0) target = $region5
    $region4: #{directed_message_passing.5} parent=1 // pred_region
      _
    $region5: #{directed_message_passing.5} parent=1 // pred_fallthru
      _
    // Predicated region
    $region6: #{directed_message_passing.5} parent=1 // pred_check
      _
    $region7: #{directed_message_passing.5} parent=1 // pred_check_branch
      %16 = sbr.rel (0) target = $region9
    $region8: #{directed_message_passing.5} parent=1 // pred_region
      _
    $region9: #{directed_message_passing.5} parent=1 // pred_fallthru
      _
    // Predicated region
    $region10: #{directed_message_passing.5} parent=1 // pred_check
      _
    $region11: #{directed_message_passing.5} parent=1 // pred_check_branch
      %18 = sbr.rel (0) target = $region13
    $region12: #{directed_message_passing.5} parent=1 // pred_region
      _
    $region13: #{directed_message_passing.5} parent=1 // pred_fallthru
      _
    // Predicated region
    $region14: #{directed_message_passing.5} parent=1 // pred_check
      _
    $region15: #{directed_message_passing.5} parent=1 // pred_check_branch
      %20 = sbr.rel (0) target = $region17
    $region16: #{directed_message_passing.5} parent=1 // pred_region
      _
    $region17: #{directed_message_passing.5} parent=1 // pred_fallthru
      _
    // Predicated region
    $region18: #{directed_message_passing.5} parent=1 // pred_check
      _
    $region19: #{directed_message_passing.5} parent=1 // pred_check_branch
      %22 = sbr.rel (0) target = $region21
    $region20: #{directed_message_passing.5} parent=1 // pred_region
      _
    $region21: #{directed_message_passing.5} parent=1 // pred_fallthru
      _
    // Predicated region
    $region22: #{directed_message_passing.5} parent=1 // pred_check
      _
    $region23: #{directed_message_passing.5} parent=1 // pred_check_branch
      %24 = sbr.rel (0) target = $region25
    $region24: #{directed_message_passing.5} parent=1 // pred_region
      _
    $region25: #{directed_message_passing.5} parent=1 // pred_fallthru
      _
    // Predicated region
    $region26: #{directed_message_passing.5} parent=1 // pred_check
      _
    $region27: #{directed_message_passing.5} parent=1 // pred_check_branch
      %26 = sbr.rel (0) target = $region29
    $region28: #{directed_message_passing.5} parent=1 // pred_region
      _
    $region29: #{directed_message_passing.5} parent=1 // pred_fallthru
      _
    %v27 = vld [vmem:[%s0] sm:$0xff]
    %v28 = vld [vmem:[%s2] sm:$0xff]
    %v29 = vld [vmem:[%s2 + $0x8] sm:$0xff]
    %v30 = vld [vmem:[%s1] sm:$0xff]
    %v31 = vld [vmem:[%s3] sm:$0xff]
    %v32 = vld [vmem:[%s3 + $0x8] sm:$0xff]
    %v33 = vld [vmem:[%s3 + $0x10] sm:$0xff]
    %v34 = vld [vmem:[%s3 + $0x18] sm:$0xff]
    %v35 = vld [vmem:[%s3 + $0x20] sm:$0xff]
    %v36 = vld [vmem:[%s3 + $0x28] sm:$0xff]
    %v37 = vld [vmem:[%s3 + $0x30] sm:$0xff]
    %v38 = vld [vmem:[%s3 + $0x38] sm:$0xff]
    %v39 = vld [vmem:[%s3 + $0x40] sm:$0xff]
    %v40 = vld [vmem:[%s3 + $0x48] sm:$0xff]
    %v41 = vld [vmem:[%s3 + $0x50] sm:$0xff]
    %v42 = vld [vmem:[%s3 + $0x58] sm:$0xff]
    %v43 = vld [vmem:[%s3 + $0x60] sm:$0xff]
    %v44 = vld [vmem:[%s3 + $0x68] sm:$0xff]
    %v45 = vld [vmem:[%s3 + $0x70] sm:$0xff]
    %v46 = vld [vmem:[%s3 + $0x78] sm:$0xff]
    %47 = vmatpush.msra.mxu0 %v46
    %48 = vmatpush.msra.mxu0 %v45
    %49 = vmatpush.msra.mxu0 %v44
    %50 = vmatpush.msra.mxu0 %v43
    %51 = vmatpush.msra.mxu0 %v42
    %52 = vmatpush.msra.mxu0 %v41
    %53 = vmatpush.msra.mxu0 %v40
    %54 = vmatpush.msra.mxu0 %v39
    %55 = vmatpush.msra.mxu0 %v38
    %56 = vmatpush.msra.mxu0 %v37
    %57 = vmatpush.msra.mxu0 %v36
    %58 = vmatpush.msra.mxu0 %v35
    %59 = vmatpush.msra.mxu0 %v34
    %60 = vmatpush.msra.mxu0 %v33
    %61 = vmatpush.msra.mxu0 %v32
    %62 = vmatpush.msra.mxu0 %v31
    %63 = vmatmul.f32.gmra.mxu0 %v30
    %v64 = vpop.f32.mrf.mxu0
    %v65 = vadd.f32 0.0, %v64
    %66 = vdwg.mxu0
    %vm67 = vcmask 130048
    %v69 = vsel %vm67, %v27, 0
    %71 = vmatpush.msra.mxu0 0.0
    %72 = vmatpush.msra.mxu0 0.0
    %73 = vmatpush.msra.mxu0 0.0
    %74 = vmatpush.msra.mxu0 0.0
    %75 = vmatpush.msra.mxu0 0.0
    %76 = vmatpush.msra.mxu0 0.0
    %77 = vmatpush.msra.mxu0 0.0
    %78 = vmatpush.msra.mxu0 0.0
    %79 = vmatpush.msra.mxu0 0.0
    %80 = vmatpush.msra.mxu0 0.0
    %81 = vmatpush.msra.mxu0 0.0
    %82 = vmatpush.msra.mxu0 0.0
    %83 = vmatpush.msra.mxu0 0.0
    %84 = vmatpush.msra.mxu0 0.0
    %85 = vmatpush.msra.mxu0 %v29
    %86 = vmatpush.msra.mxu0 %v28
    %87 = vmatmul.f32.gmra.mxu0 %v69
    %v88 = vpop.f32.mrf.mxu0
    %v89 = vadd.f32 %v65, %v88
    %90 = vdwg.mxu0
    %v91 = vld [vmem:[%s4] sm:$0x1]
    %v93 = vperm.slane %v91, 0
    %v95 = vadd.f32 %v89, %v93
    %v96 = vmax.f32 %v95, 0.0
    %v97 = vlaneseq
    %v98 = vand.u32 %v97, 127
    %vm99 = vcmp.lt.s32.totalorder %v98, 32
    %100 = vadd.xlane.f32.xlu0 %v96
    %v101 = vpop.xlane.xlu0 %100
    %v102 = vmul.f32 %v101, 0.03125
    %v103 = vsub.f32 %v96, %v102
    %v104 = vsel %vm99, %v103, 0.0
    %v105 = vmul.f32 %v104, %v104
    %106 = vadd.xlane.f32.xlu0 %v105
    %v107 = vpop.xlane.xlu0 %106
    %v108 = vmul.f32 %v107, 0.03125
    %v109 = vadd.f32 %v108, 1e-05
    %v110 = vrsqrt.pop %v109
    %v111 = vmul.f32 %v110, %v109
    %v112 = vmul.f32 %v111, %v110
    %v113 = vmul.f32 0.5, %v112
    %v114 = vsub.f32 1.5, %v113
    %v115 = vmul.f32 %v110, %v114
    %vm116 = vweird.f32 %v109
    %vm117 = vweird.f32 %v110
    %vm118 = vmor %vm116, %vm117
    %v119 = vsel %vm118, %v110, %v115
    %v120 = vmul.f32 %v104, %v119
    %v121 = vld [vmem:[%s5] sm:$0x1]
    %v123 = vperm.slane %v121, 0
    %v125 = vmul.f32 %v120, %v123
    %v126 = vld [vmem:[%s6] sm:$0x1]
    %v128 = vperm.slane %v126, 0
    %v130 = vadd.f32 %v125, %v128
    %v131 = vmax.f32 %v130, 0.0
    %132 = vst [vmem:[#allocation2] sm:$0xff] %v131
    // Predicated region
    $region30: #{directed_message_passing.5} parent=1 // pred_check
      _
    $region31: #{directed_message_passing.5} parent=1 // pred_check_branch
      %134 = sbr.rel (0) target = $region33
    $region32: #{directed_message_passing.5} parent=1 // pred_region
      %136 = vsyncadd [#allocation3], 0
      %s138 = sshll.u32 [#allocation2], 4
      %s139 = int_to_ptr.vmem [resolvable:$true] %s138
      %s140 = sshll.u32 %s7, 4
      %s141 = int_to_ptr.hbm [resolvable:$true] %s140
      %143 = dma.vmem_to_hbm [thread:$0]  %s139, 128, %s141, [#allocation3]
    $region33: #{directed_message_passing.5} parent=1 // pred_fallthru
      _
    // Predicated region
    $region34: #{directed_message_passing.5} parent=1 // pred_check
      _
    $region35: #{directed_message_passing.5} parent=1 // pred_check_branch
      %145 = sbr.rel (0) target = $region37
    $region36: #{directed_message_passing.5} parent=1 // pred_region
      %147 = dma.done [#allocation3], 128
    $region37: #{directed_message_passing.5} parent=1 // pred_fallthru
      _
    %148 = vsyncpa [#allocation3], 1

// kernel: directed_message_passing.4
$region0: #{directed_message_passing.4}
  #allocation0 [shape = 'u32[]', space=smem, size = 0x4, offset = 0x4, fixed_abs, tag = 'smem constant byte address 0x4 - core index']
  #allocation1 [shape = 'u32[72,128]{1,0:T(1,128)}', space=vmem, size = 0x9000, scoped, tag = 'internal scratch']
  #allocation2 [shape = 'f32[128,128]{1,0:T(8,128)}', space=vmem, size = 0x10000, scoped, tag = 'scratch operand']
  #allocation3 [shape = 'f32[8,128]{1,0:T(8,128)}', space=vmem, size = 0x1000, scoped, tag = 'scratch operand']
  #allocation4 [shape = 'bf16[8,128]{1,0:T(8,128)(2,1)}', space=vmem, size = 0x800, scoped, tag = 'scratch operand']
  %s0 = inlined_call_operand.vmem [shape: s32[128,1], index: 0, kind: input, shape index: {}]
  %s1 = inlined_call_operand.vmem [shape: s32[1,128], index: 1, kind: input, shape index: {}]
  %s2 = inlined_call_operand.vmem [shape: s32[1,128], index: 2, kind: input, shape index: {}]
  %s3 = inlined_call_operand.vmem [shape: f32[8,128], index: 3, kind: input, shape index: {}]
  %s4 = inlined_call_operand.vmem [shape: f32[128,128], index: 4, kind: input, shape index: {}]
  %s5 = inlined_call_operand.vmem [shape: f32[128,128], index: 5, kind: input, shape index: {}]
  %s6 = inlined_call_operand.vmem [shape: f32[1,128], index: 6, kind: input, shape index: {}]
  %s7 = inlined_call_operand.vmem [shape: f32[128,128], index: 7, kind: input, shape index: {}]
  %s8 = inlined_call_operand.vmem [shape: f32[1,128], index: 8, kind: input, shape index: {}]
  %s9 = inlined_call_operand.vmem [shape: f32[8,128], index: 9, kind: output, shape index: {}]
  %s10 = sld [smem:[#allocation0]]
  $region89: #{directed_message_passing.4} parent=0
    _
  %s12 = ssub.s32 1, %s10
  %s13 = scalar_select 0, %s12, %s10
  loop: start=0, step=1, limit=5
  $region2: #{directed_message_passing.4} parent=0 // loop_pre_header
    _
  $region3: #{directed_message_passing.4} parent=0 // loop_header
    %s15 = sphi 0, %s19
    %p16 = scmp.ge.s32.totalorder %s15, 5
    %s22 = sphi 0, %s34
    %s23 = sphi 0, %s30
    %s24 = sphi 0, %s22
    %s25 = sphi 0, %s23
    %s26 = sphi 0, %s24
    %s27 = sphi 0, %s25
    %s37 = sphi 0, %s39
    %s40 = sphi 0, %s37
    %s41 = sphi 0, %s40
    %s57 = sphi 0, %s41
    %s63 = sphi 0, %s65
    %s66 = sphi 0, %s63
    %s67 = sphi 0, %s66
    %s83 = sphi 0, %s67
    %s89 = sphi 0, %s91
    %s92 = sphi 0, %s89
    %s93 = sphi 0, %s92
    %s109 = sphi 0, %s93
    %s113 = sphi 0, %s113
    %s115 = sphi 0, %s113
    %s116 = sphi 0, %s115
    %s130 = sphi 0, %s116
    %s134 = sphi 0, %s134
    %s136 = sphi 0, %s134
    %s137 = sphi 0, %s136
    %s151 = sphi 0, %s137
    %s155 = sphi 0, %s155
    %s157 = sphi 0, %s155
    %s158 = sphi 0, %s157
    %s172 = sphi 0, %s158
    %s176 = sphi 0, %s176
    %s178 = sphi 0, %s176
    %s179 = sphi 0, %s178
    %s193 = sphi 0, %s179
    %s197 = sphi 0, %s197
    %s199 = sphi 0, %s197
    %s200 = sphi 0, %s199
    %s214 = sphi 0, %s200
    %s218 = sphi 0, %s218
    %s220 = sphi 0, %s218
    %s221 = sphi 0, %s220
    %s235 = sphi 0, %s221
    %s239 = sphi 0, %s239
    %s241 = sphi 0, %s239
    %s242 = sphi 0, %s241
    %s256 = sphi 0, %s242
  $region4: #{directed_message_passing.4} parent=0 // loop_header_branch
    %18 = sbr.rel (%p16) target = $region8
  $region5: #{directed_message_passing.4} parent=0 // loop_body
    %s20 = ssub.s32 %s15, 1
    %s21 = ssub.s32 %s15, 2
    %s28 = sadd.s32 1, %s23
    %p29 = scmp.ge.s32.totalorder %s28, 1
    %s30 = scalar_select %p29, 0, %s28
    %s31 = sadd.s32 1, %s22
    %s32 = scalar_select %p29, %s31, %s22
    %p33 = scmp.ge.s32.totalorder %s32, 3
    %s34 = scalar_select %p33, 0, %s32
    %s35 = ssub.s32 %s23, %s30
    %p36 = scmp.eq.s32.totalorder %s35, 0
    %s38 = sadd.s32 %s37, 1
    %s39 = scalar_select %p36, %s37, %s38
    %p42 = pneg %p36
    %p43 = scmp.eq.s32.totalorder %s15, 2
    %p44 = por %p42, %p43
    %p45 = scmp.ne.s32.totalorder %s37, %s40
    %p46 = scmp.eq.s32.totalorder %s15, 0
    %p47 = por %p45, %p46
    %p48 = scmp.ne.s32.totalorder %s37, %s40
    %p49 = scmp.eq.s32.totalorder %s20, 2
    %p50 = por %p48, %p49
    %p51 = scmp.ne.s32.totalorder %s40, %s41
    %p52 = scmp.eq.s32.totalorder %s20, 0
    %p53 = por %p51, %p52
    %p54 = scmp.ne.s32.totalorder %s40, %s41
    %p55 = scmp.eq.s32.totalorder %s21, 2
    %p56 = por %p54, %p55
    %p58 = scmp.ne.s32.totalorder %s41, %s57
    %p59 = scmp.eq.s32.totalorder %s21, 0
    %p60 = por %p58, %p59
    %s61 = ssub.s32 %s23, %s30
    %p62 = scmp.eq.s32.totalorder %s61, 0
    %s64 = sadd.s32 %s63, 1
    %s65 = scalar_select %p62, %s63, %s64
    %p68 = pneg %p62
    %p69 = scmp.eq.s32.totalorder %s15, 2
    %p70 = por %p68, %p69
    %p71 = scmp.ne.s32.totalorder %s63, %s66
    %p72 = scmp.eq.s32.totalorder %s15, 0
    %p73 = por %p71, %p72
    %p74 = scmp.ne.s32.totalorder %s63, %s66
    %p75 = scmp.eq.s32.totalorder %s20, 2
    %p76 = por %p74, %p75
    %p77 = scmp.ne.s32.totalorder %s66, %s67
    %p78 = scmp.eq.s32.totalorder %s20, 0
    %p79 = por %p77, %p78
    %p80 = scmp.ne.s32.totalorder %s66, %s67
    %p81 = scmp.eq.s32.totalorder %s21, 2
    %p82 = por %p80, %p81
    %p84 = scmp.ne.s32.totalorder %s67, %s83
    %p85 = scmp.eq.s32.totalorder %s21, 0
    %p86 = por %p84, %p85
    %s87 = ssub.s32 %s23, %s30
    %p88 = scmp.eq.s32.totalorder %s87, 0
    %s90 = sadd.s32 %s89, 1
    %s91 = scalar_select %p88, %s89, %s90
    %p94 = pneg %p88
    %p95 = scmp.eq.s32.totalorder %s15, 2
    %p96 = por %p94, %p95
    %p97 = scmp.ne.s32.totalorder %s89, %s92
    %p98 = scmp.eq.s32.totalorder %s15, 0
    %p99 = por %p97, %p98
    %p100 = scmp.ne.s32.totalorder %s89, %s92
    %p101 = scmp.eq.s32.totalorder %s20, 2
    %p102 = por %p100, %p101
    %p103 = scmp.ne.s32.totalorder %s92, %s93
    %p104 = scmp.eq.s32.totalorder %s20, 0
    %p105 = por %p103, %p104
    %p106 = scmp.ne.s32.totalorder %s92, %s93
    %p107 = scmp.eq.s32.totalorder %s21, 2
    %p108 = por %p106, %p107
    %p110 = scmp.ne.s32.totalorder %s93, %s109
    %p111 = scmp.eq.s32.totalorder %s21, 0
    %p112 = por %p110, %p111
    %s114 = sadd.s32 %s113, 1
    %p117 = scmp.eq.s32.totalorder %s15, 2
    %p118 = scmp.ne.s32.totalorder %s113, %s115
    %p119 = scmp.eq.s32.totalorder %s15, 0
    %p120 = por %p118, %p119
    %p121 = scmp.ne.s32.totalorder %s113, %s115
    %p122 = scmp.eq.s32.totalorder %s20, 2
    %p123 = por %p121, %p122
    %p124 = scmp.ne.s32.totalorder %s115, %s116
    %p125 = scmp.eq.s32.totalorder %s20, 0
    %p126 = por %p124, %p125
    %p127 = scmp.ne.s32.totalorder %s115, %s116
    %p128 = scmp.eq.s32.totalorder %s21, 2
    %p129 = por %p127, %p128
    %p131 = scmp.ne.s32.totalorder %s116, %s130
    %p132 = scmp.eq.s32.totalorder %s21, 0
    %p133 = por %p131, %p132
    %s135 = sadd.s32 %s134, 1
    %p138 = scmp.eq.s32.totalorder %s15, 2
    %p139 = scmp.ne.s32.totalorder %s134, %s136
    %p140 = scmp.eq.s32.totalorder %s15, 0
    %p141 = por %p139, %p140
    %p142 = scmp.ne.s32.totalorder %s134, %s136
    %p143 = scmp.eq.s32.totalorder %s20, 2
    %p144 = por %p142, %p143
    %p145 = scmp.ne.s32.totalorder %s136, %s137
    %p146 = scmp.eq.s32.totalorder %s20, 0
    %p147 = por %p145, %p146
    %p148 = scmp.ne.s32.totalorder %s136, %s137
    %p149 = scmp.eq.s32.totalorder %s21, 2
    %p150 = por %p148, %p149
    %p152 = scmp.ne.s32.totalorder %s137, %s151
    %p153 = scmp.eq.s32.totalorder %s21, 0
    %p154 = por %p152, %p153
    %s156 = sadd.s32 %s155, 1
    %p159 = scmp.eq.s32.totalorder %s15, 2
    %p160 = scmp.ne.s32.totalorder %s155, %s157
    %p161 = scmp.eq.s32.totalorder %s15, 0
    %p162 = por %p160, %p161
    %p163 = scmp.ne.s32.totalorder %s155, %s157
    %p164 = scmp.eq.s32.totalorder %s20, 2
    %p165 = por %p163, %p164
    %p166 = scmp.ne.s32.totalorder %s157, %s158
    %p167 = scmp.eq.s32.totalorder %s20, 0
    %p168 = por %p166, %p167
    %p169 = scmp.ne.s32.totalorder %s157, %s158
    %p170 = scmp.eq.s32.totalorder %s21, 2
    %p171 = por %p169, %p170
    %p173 = scmp.ne.s32.totalorder %s158, %s172
    %p174 = scmp.eq.s32.totalorder %s21, 0
    %p175 = por %p173, %p174
    %s177 = sadd.s32 %s176, 1
    %p180 = scmp.eq.s32.totalorder %s15, 2
    %p181 = scmp.ne.s32.totalorder %s176, %s178
    %p182 = scmp.eq.s32.totalorder %s15, 0
    %p183 = por %p181, %p182
    %p184 = scmp.ne.s32.totalorder %s176, %s178
    %p185 = scmp.eq.s32.totalorder %s20, 2
    %p186 = por %p184, %p185
    %p187 = scmp.ne.s32.totalorder %s178, %s179
    %p188 = scmp.eq.s32.totalorder %s20, 0
    %p189 = por %p187, %p188
    %p190 = scmp.ne.s32.totalorder %s178, %s179
    %p191 = scmp.eq.s32.totalorder %s21, 2
    %p192 = por %p190, %p191
    %p194 = scmp.ne.s32.totalorder %s179, %s193
    %p195 = scmp.eq.s32.totalorder %s21, 0
    %p196 = por %p194, %p195
    %s198 = sadd.s32 %s197, 1
    %p201 = scmp.eq.s32.totalorder %s15, 2
    %p202 = scmp.ne.s32.totalorder %s197, %s199
    %p203 = scmp.eq.s32.totalorder %s15, 0
    %p204 = por %p202, %p203
    %p205 = scmp.ne.s32.totalorder %s197, %s199
    %p206 = scmp.eq.s32.totalorder %s20, 2
    %p207 = por %p205, %p206
    %p208 = scmp.ne.s32.totalorder %s199, %s200
    %p209 = scmp.eq.s32.totalorder %s20, 0
    %p210 = por %p208, %p209
    %p211 = scmp.ne.s32.totalorder %s199, %s200
    %p212 = scmp.eq.s32.totalorder %s21, 2
    %p213 = por %p211, %p212
    %p215 = scmp.ne.s32.totalorder %s200, %s214
    %p216 = scmp.eq.s32.totalorder %s21, 0
    %p217 = por %p215, %p216
    %s219 = sadd.s32 %s218, 1
    %p222 = scmp.eq.s32.totalorder %s15, 2
    %p223 = scmp.ne.s32.totalorder %s218, %s220
    %p224 = scmp.eq.s32.totalorder %s15, 0
    %p225 = por %p223, %p224
    %p226 = scmp.ne.s32.totalorder %s218, %s220
    %p227 = scmp.eq.s32.totalorder %s20, 2
    %p228 = por %p226, %p227
    %p229 = scmp.ne.s32.totalorder %s220, %s221
    %p230 = scmp.eq.s32.totalorder %s20, 0
    %p231 = por %p229, %p230
    %p232 = scmp.ne.s32.totalorder %s220, %s221
    %p233 = scmp.eq.s32.totalorder %s21, 2
    %p234 = por %p232, %p233
    %p236 = scmp.ne.s32.totalorder %s221, %s235
    %p237 = scmp.eq.s32.totalorder %s21, 0
    %p238 = por %p236, %p237
    %s240 = sadd.s32 %s239, 1
    %p243 = scmp.eq.s32.totalorder %s15, 2
    %p244 = scmp.ne.s32.totalorder %s239, %s241
    %p245 = scmp.eq.s32.totalorder %s15, 0
    %p246 = por %p244, %p245
    %p247 = scmp.ne.s32.totalorder %s239, %s241
    %p248 = scmp.eq.s32.totalorder %s20, 2
    %p249 = por %p247, %p248
    %p250 = scmp.ne.s32.totalorder %s241, %s242
    %p251 = scmp.eq.s32.totalorder %s20, 0
    %p252 = por %p250, %p251
    %p253 = scmp.ne.s32.totalorder %s241, %s242
    %p254 = scmp.eq.s32.totalorder %s21, 2
    %p255 = por %p253, %p254
    %p257 = scmp.ne.s32.totalorder %s242, %s256
    %p258 = scmp.eq.s32.totalorder %s21, 0
    %p259 = por %p257, %p258
    %p260 = scmp.le.s32.totalorder 1, %s15
    %p261 = scmp.lt.s32.totalorder %s15, 4
    %p262 = pnand %p260, %p261
    %p263 = pneg %p262
    // Predicated region
    $region9: #{directed_message_passing.4} parent=5 // pred_check
      _
    $region10: #{directed_message_passing.4} parent=5 // pred_check_branch
      %265 = sbr.rel (%p262) target = $region12
    $region11: #{directed_message_passing.4} parent=5 // pred_region
      %s266 = ssub.s32 %s15, 1
      // Predicated region
      $region13: #{directed_message_passing.4} parent=11 // pred_check
        %p267 = pneg %p53
      $region14: #{directed_message_passing.4} parent=11 // pred_check_branch
        %269 = sbr.rel (%p267) target = $region16
      $region15: #{directed_message_passing.4} parent=11 // pred_region
        %s270 = smul.u32 16, %s25
        %p271 = scmp.lt.s32.totalorder %s270, 15
        %s272 = scalar_select %p271, %s270, 15
        %s273 = smul.addr %s272, 8
        %s274 = scalar_lea.vmem %s0, %s273
        %s275 = smul.u32 16, %s25
      $region16: #{directed_message_passing.4} parent=11 // pred_fallthru
        _
      // Predicated region
      $region17: #{directed_message_passing.4} parent=11 // pred_check
        %p276 = pneg %p79
      $region18: #{directed_message_passing.4} parent=11 // pred_check_branch
        %278 = sbr.rel (%p276) target = $region20
      $region19: #{directed_message_passing.4} parent=11 // pred_region
        %p279 = scmp.lt.s32.totalorder %s25, 0
        %s280 = scalar_select %p279, %s25, 0
        %s281 = scalar_lea.vmem %s1, %s280
      $region20: #{directed_message_passing.4} parent=11 // pred_fallthru
        _
      // Predicated region
      $region21: #{directed_message_passing.4} parent=11 // pred_check
        %p282 = pneg %p105
      $region22: #{directed_message_passing.4} parent=11 // pred_check_branch
        %284 = sbr.rel (%p282) target = $region24
      $region23: #{directed_message_passing.4} parent=11 // pred_region
        %p285 = scmp.lt.s32.totalorder %s25, 0
        %s286 = scalar_select %p285, %s25, 0
        %s287 = scalar_lea.vmem %s2, %s286
      $region24: #{directed_message_passing.4} parent=11 // pred_fallthru
        _
      // Predicated region
      $region25: #{directed_message_passing.4} parent=11 // pred_check
        %p288 = pneg %p126
      $region26: #{directed_message_passing.4} parent=11 // pred_check_branch
        %290 = sbr.rel (%p288) target = $region28
      $region27: #{directed_message_passing.4} parent=11 // pred_region
        _
      $region28: #{directed_message_passing.4} parent=11 // pred_fallthru
        _
      // Predicated region
      $region29: #{directed_message_passing.4} parent=11 // pred_check
        %p291 = pneg %p147
      $region30: #{directed_message_passing.4} parent=11 // pred_check_branch
        %293 = sbr.rel (%p291) target = $region32
      $region31: #{directed_message_passing.4} parent=11 // pred_region
        _
      $region32: #{directed_message_passing.4} parent=11 // pred_fallthru
        _
      // Predicated region
      $region33: #{directed_message_passing.4} parent=11 // pred_check
        %p294 = pneg %p168
      $region34: #{directed_message_passing.4} parent=11 // pred_check_branch
        %296 = sbr.rel (%p294) target = $region36
      $region35: #{directed_message_passing.4} parent=11 // pred_region
        _
      $region36: #{directed_message_passing.4} parent=11 // pred_fallthru
        _
      // Predicated region
      $region37: #{directed_message_passing.4} parent=11 // pred_check
        %p297 = pneg %p189
      $region38: #{directed_message_passing.4} parent=11 // pred_check_branch
        %299 = sbr.rel (%p297) target = $region40
      $region39: #{directed_message_passing.4} parent=11 // pred_region
        _
      $region40: #{directed_message_passing.4} parent=11 // pred_fallthru
        _
      // Predicated region
      $region41: #{directed_message_passing.4} parent=11 // pred_check
        %p300 = pneg %p210
      $region42: #{directed_message_passing.4} parent=11 // pred_check_branch
        %302 = sbr.rel (%p300) target = $region44
      $region43: #{directed_message_passing.4} parent=11 // pred_region
        _
      $region44: #{directed_message_passing.4} parent=11 // pred_fallthru
        _
      // Predicated region
      $region45: #{directed_message_passing.4} parent=11 // pred_check
        %p303 = pneg %p231
      $region46: #{directed_message_passing.4} parent=11 // pred_check_branch
        %305 = sbr.rel (%p303) target = $region48
      $region47: #{directed_message_passing.4} parent=11 // pred_region
        _
      $region48: #{directed_message_passing.4} parent=11 // pred_fallthru
        _
    $region12: #{directed_message_passing.4} parent=5 // pred_fallthru
      _
    %p306 = scmp.lt.s32.totalorder %s15, 3
    // Predicated region
    $region49: #{directed_message_passing.4} parent=5 // pred_check
      %p307 = pneg %p306
    $region50: #{directed_message_passing.4} parent=5 // pred_check_branch
      %309 = sbr.rel (%p307) target = $region52
    $region51: #{directed_message_passing.4} parent=5 // pred_region
      _
    $region52: #{directed_message_passing.4} parent=5 // pred_fallthru
      _
    %p310 = scmp.le.s32.totalorder 1, %s15
    %p311 = scmp.lt.s32.totalorder %s15, 4
    %p312 = pnand %p310, %p311
    %p313 = pneg %p312
    // Predicated region
    $region53: #{directed_message_passing.4} parent=5 // pred_check
      _
    $region54: #{directed_message_passing.4} parent=5 // pred_check_branch
      %315 = sbr.rel (%p312) target = $region56
    $region55: #{directed_message_passing.4} parent=5 // pred_region
      %s316 = ssub.s32 %s15, 1
      %s317 = smul.u32 16, %s25
      %p318 = scmp.lt.s32.totalorder %s317, 15
      %s319 = scalar_select %p318, %s317, 15
      %s320 = smul.addr %s319, 8
      %s321 = scalar_lea.vmem %s0, %s320
      %p322 = pneg %p53
      %p323 = pneg %p50
      %p324 = scmp.lt.s32.totalorder %s25, 0
      %s325 = scalar_select %p324, %s25, 0
      %s326 = scalar_lea.vmem %s1, %s325
      %p327 = pneg %p79
      %p328 = pneg %p76
      %p329 = scmp.lt.s32.totalorder %s25, 0
      %s330 = scalar_select %p329, %s25, 0
      %s331 = scalar_lea.vmem %s2, %s330
      %p332 = pneg %p105
      %p333 = pneg %p102
      %p334 = pneg %p126
      %p335 = pneg %p123
      %p336 = pneg %p147
      %p337 = pneg %p144
      %p338 = pneg %p168
      %p339 = pneg %p165
      %p340 = pneg %p189
      %p341 = pneg %p186
      %p342 = pneg %p210
      %p343 = pneg %p207
      %p344 = pneg %p231
      %p345 = pneg %p228
      %p346 = pneg %p252
      %p347 = pneg %p249
      %s348 = smul.u32 16, %s25
      %p349 = scmp.lt.s32.totalorder %s348, 15
      %s350 = scalar_select %p349, %s348, 15
      %s351 = smul.addr %s350, 8
      %s352 = scalar_lea.vmem %s0, %s351
      %s353 = smul.u32 16, %s25
      %p354 = scmp.lt.s32.totalorder %s25, 0
      %s355 = scalar_select %p354, %s25, 0
      %s356 = scalar_lea.vmem %s1, %s355
      %p357 = scmp.lt.s32.totalorder %s25, 0
      %s358 = scalar_select %p357, %s25, 0
      %s359 = scalar_lea.vmem %s2, %s358
      %p361 = scmp.eq.s32.totalorder %s24, 0
      %p362 = scmp.eq.s32.totalorder %s25, 0
      %p363 = pnand %p361, %p362
      %p364 = pneg %p363
      // Predicated region
      $region57: #{directed_message_passing.4} parent=55 // pred_check
        _
      $region58: #{directed_message_passing.4} parent=55 // pred_check_branch
        %366 = sbr.rel (%p363) target = $region60
      $region59: #{directed_message_passing.4} parent=55 // pred_region
        %v367 = vld [vmem:[%s4] sm:$0xff]
        %v368 = vld [vmem:[%s4 + $0x8] sm:$0xff]
        %v369 = vld [vmem:[%s4 + $0x10] sm:$0xff]
        %v370 = vld [vmem:[%s4 + $0x18] sm:$0xff]
        %v371 = vld [vmem:[%s4 + $0x20] sm:$0xff]
        %v372 = vld [vmem:[%s4 + $0x28] sm:$0xff]
        %v373 = vld [vmem:[%s4 + $0x30] sm:$0xff]
        %v374 = vld [vmem:[%s4 + $0x38] sm:$0xff]
        %v375 = vld [vmem:[%s4 + $0x40] sm:$0xff]
        %v376 = vld [vmem:[%s4 + $0x48] sm:$0xff]
        %v377 = vld [vmem:[%s4 + $0x50] sm:$0xff]
        %v378 = vld [vmem:[%s4 + $0x58] sm:$0xff]
        %v379 = vld [vmem:[%s4 + $0x60] sm:$0xff]
        %v380 = vld [vmem:[%s4 + $0x68] sm:$0xff]
        %v381 = vld [vmem:[%s4 + $0x70] sm:$0xff]
        %v382 = vld [vmem:[%s4 + $0x78] sm:$0xff]
        %383 = vst [vmem:[#allocation2] sm:$0xff] %v367
        %384 = vst [vmem:[#allocation2 + $0x8] sm:$0xff] %v368
        %385 = vst [vmem:[#allocation2 + $0x10] sm:$0xff] %v369
        %386 = vst [vmem:[#allocation2 + $0x18] sm:$0xff] %v370
        %387 = vst [vmem:[#allocation2 + $0x20] sm:$0xff] %v371
        %388 = vst [vmem:[#allocation2 + $0x28] sm:$0xff] %v372
        %389 = vst [vmem:[#allocation2 + $0x30] sm:$0xff] %v373
        %390 = vst [vmem:[#allocation2 + $0x38] sm:$0xff] %v374
        %391 = vst [vmem:[#allocation2 + $0x40] sm:$0xff] %v375
        %392 = vst [vmem:[#allocation2 + $0x48] sm:$0xff] %v376
        %393 = vst [vmem:[#allocation2 + $0x50] sm:$0xff] %v377
        %394 = vst [vmem:[#allocation2 + $0x58] sm:$0xff] %v378
        %395 = vst [vmem:[#allocation2 + $0x60] sm:$0xff] %v379
        %396 = vst [vmem:[#allocation2 + $0x68] sm:$0xff] %v380
        %397 = vst [vmem:[#allocation2 + $0x70] sm:$0xff] %v381
        %398 = vst [vmem:[#allocation2 + $0x78] sm:$0xff] %v382
        %v399 = vld [vmem:[%s3] sm:$0xff]
        %400 = vst [vmem:[#allocation3] sm:$0xff] %v399
      $region60: #{directed_message_passing.4} parent=55 // pred_fallthru
        _
      // Predicated region
      $region61: #{directed_message_passing.4} parent=55 // pred_check
        %p401 = pneg %p362
      $region62: #{directed_message_passing.4} parent=55 // pred_check_branch
        %403 = sbr.rel (%p401) target = $region64
      $region63: #{directed_message_passing.4} parent=55 // pred_region
        %v404 = vld [vmem:[#allocation3] sm:$0xff]
        %v405 = vpack.c.bf16 %v404, %v404
        %406 = vst [vmem:[#allocation4] sm:$0xf] %v405
      $region64: #{directed_message_passing.4} parent=55 // pred_fallthru
        _
      %s407 = smul.u32 %s25, 128
      %s408 = scalar_lea.vmem [#allocation2], %s407
      %v409 = vld [vmem:[%s408] sm:$0xff]
      %v410 = vld [vmem:[%s408 + $0x8] sm:$0xff]
      %v411 = vld [vmem:[%s408 + $0x10] sm:$0xff]
      %v412 = vld [vmem:[%s408 + $0x18] sm:$0xff]
      %v413 = vld [vmem:[%s408 + $0x20] sm:$0xff]
      %v414 = vld [vmem:[%s408 + $0x28] sm:$0xff]
      %v415 = vld [vmem:[%s408 + $0x30] sm:$0xff]
      %v416 = vld [vmem:[%s408 + $0x38] sm:$0xff]
      %v417 = vld [vmem:[%s408 + $0x40] sm:$0xff]
      %v418 = vld [vmem:[%s408 + $0x48] sm:$0xff]
      %v419 = vld [vmem:[%s408 + $0x50] sm:$0xff]
      %v420 = vld [vmem:[%s408 + $0x58] sm:$0xff]
      %v421 = vld [vmem:[%s408 + $0x60] sm:$0xff]
      %v422 = vld [vmem:[%s408 + $0x68] sm:$0xff]
      %v423 = vld [vmem:[%s408 + $0x70] sm:$0xff]
      %v424 = vld [vmem:[%s408 + $0x78] sm:$0xff]
      %s425 = scalar_lea.vmem %s4, %s407
      %v426 = vld [vmem:[%s425] sm:$0xff]
      %v427 = vld [vmem:[%s425 + $0x8] sm:$0xff]
      %v428 = vld [vmem:[%s425 + $0x10] sm:$0xff]
      %v429 = vld [vmem:[%s425 + $0x18] sm:$0xff]
      %v430 = vld [vmem:[%s425 + $0x20] sm:$0xff]
      %v431 = vld [vmem:[%s425 + $0x28] sm:$0xff]
      %v432 = vld [vmem:[%s425 + $0x30] sm:$0xff]
      %v433 = vld [vmem:[%s425 + $0x38] sm:$0xff]
      %v434 = vld [vmem:[%s425 + $0x40] sm:$0xff]
      %v435 = vld [vmem:[%s425 + $0x48] sm:$0xff]
      %v436 = vld [vmem:[%s425 + $0x50] sm:$0xff]
      %v437 = vld [vmem:[%s425 + $0x58] sm:$0xff]
      %v438 = vld [vmem:[%s425 + $0x60] sm:$0xff]
      %v439 = vld [vmem:[%s425 + $0x68] sm:$0xff]
      %v440 = vld [vmem:[%s425 + $0x70] sm:$0xff]
      %v441 = vld [vmem:[%s425 + $0x78] sm:$0xff]
      %v442 = vlaneseq
      %v443 = vand.u32 %v442, 127
      %v444 = vld [vmem:[%s352] sm:$0xff]
      %v445 = vld [vmem:[%s352 + $0x8] sm:$0xff]
      %v446 = vld [vmem:[%s352 + $0x10] sm:$0xff]
      %v447 = vld [vmem:[%s352 + $0x18] sm:$0xff]
      %v448 = vld [vmem:[%s352 + $0x20] sm:$0xff]
      %v449 = vld [vmem:[%s352 + $0x28] sm:$0xff]
      %v450 = vld [vmem:[%s352 + $0x30] sm:$0xff]
      %v451 = vld [vmem:[%s352 + $0x38] sm:$0xff]
      %v452 = vld [vmem:[%s352 + $0x40] sm:$0xff]
      %v453 = vld [vmem:[%s352 + $0x48] sm:$0xff]
      %v454 = vld [vmem:[%s352 + $0x50] sm:$0xff]
      %v455 = vld [vmem:[%s352 + $0x58] sm:$0xff]
      %v456 = vld [vmem:[%s352 + $0x60] sm:$0xff]
      %v457 = vld [vmem:[%s352 + $0x68] sm:$0xff]
      %v458 = vld [vmem:[%s352 + $0x70] sm:$0xff]
      %v459 = vld [vmem:[%s352 + $0x78] sm:$0xff]
      %460 = vset.pattern.permute.xlu0 0
      %461 = vperm.xlu0 %460, %v444
      %v462 = vpop.permute.xlu0 %461
      %463 = vset.pattern.permute.xlu0 0
      %464 = vperm.xlu0 %463, %v445
      %v465 = vpop.permute.xlu0 %464
      %466 = vset.pattern.permute.xlu0 0
      %467 = vperm.xlu0 %466, %v446
      %v468 = vpop.permute.xlu0 %467
      %469 = vset.pattern.permute.xlu0 0
      %470 = vperm.xlu0 %469, %v447
      %v471 = vpop.permute.xlu0 %470
      %472 = vset.pattern.permute.xlu0 0
      %473 = vperm.xlu0 %472, %v448
      %v474 = vpop.permute.xlu0 %473
      %475 = vset.pattern.permute.xlu0 0
      %476 = vperm.xlu0 %475, %v449
      %v477 = vpop.permute.xlu0 %476
      %478 = vset.pattern.permute.xlu0 0
      %479 = vperm.xlu0 %478, %v450
      %v480 = vpop.permute.xlu0 %479
      %481 = vset.pattern.permute.xlu0 0
      %482 = vperm.xlu0 %481, %v451
      %v483 = vpop.permute.xlu0 %482
      %484 = vset.pattern.permute.xlu0 0
      %485 = vperm.xlu0 %484, %v452
      %v486 = vpop.permute.xlu0 %485
      %487 = vset.pattern.permute.xlu0 0
      %488 = vperm.xlu0 %487, %v453
      %v489 = vpop.permute.xlu0 %488
      %490 = vset.pattern.permute.xlu0 0
      %491 = vperm.xlu0 %490, %v454
      %v492 = vpop.permute.xlu0 %491
      %493 = vset.pattern.permute.xlu0 0
      %494 = vperm.xlu0 %493, %v455
      %v495 = vpop.permute.xlu0 %494
      %496 = vset.pattern.permute.xlu0 0
      %497 = vperm.xlu0 %496, %v456
      %v498 = vpop.permute.xlu0 %497
      %499 = vset.pattern.permute.xlu0 0
      %500 = vperm.xlu0 %499, %v457
      %v501 = vpop.permute.xlu0 %500
      %502 = vset.pattern.permute.xlu0 0
      %503 = vperm.xlu0 %502, %v458
      %v504 = vpop.permute.xlu0 %503
      %505 = vset.pattern.permute.xlu0 0
      %506 = vperm.xlu0 %505, %v459
      %v507 = vpop.permute.xlu0 %506
      %vm508 = vcmp.eq.s32.totalorder %v443, %v462
      %vm509 = vcmp.eq.s32.totalorder %v443, %v465
      %vm510 = vcmp.eq.s32.totalorder %v443, %v468
      %vm511 = vcmp.eq.s32.totalorder %v443, %v471
      %vm512 = vcmp.eq.s32.totalorder %v443, %v474
      %vm513 = vcmp.eq.s32.totalorder %v443, %v477
      %vm514 = vcmp.eq.s32.totalorder %v443, %v480
      %vm515 = vcmp.eq.s32.totalorder %v443, %v483
      %vm516 = vcmp.eq.s32.totalorder %v443, %v486
      %vm517 = vcmp.eq.s32.totalorder %v443, %v489
      %vm518 = vcmp.eq.s32.totalorder %v443, %v492
      %vm519 = vcmp.eq.s32.totalorder %v443, %v495
      %vm520 = vcmp.eq.s32.totalorder %v443, %v498
      %vm521 = vcmp.eq.s32.totalorder %v443, %v501
      %vm522 = vcmp.eq.s32.totalorder %v443, %v504
      %vm523 = vcmp.eq.s32.totalorder %v443, %v507
      %v524 = vsel %vm508, 1, 0
      %v525 = vsel %vm509, 1, 0
      %v526 = vsel %vm510, 1, 0
      %v527 = vsel %vm511, 1, 0
      %v528 = vsel %vm512, 1, 0
      %v529 = vsel %vm513, 1, 0
      %v530 = vsel %vm514, 1, 0
      %v531 = vsel %vm515, 1, 0
      %v532 = vsel %vm516, 1, 0
      %v533 = vsel %vm517, 1, 0
      %v534 = vsel %vm518, 1, 0
      %v535 = vsel %vm519, 1, 0
      %v536 = vsel %vm520, 1, 0
      %v537 = vsel %vm521, 1, 0
      %v538 = vsel %vm522, 1, 0
      %v539 = vsel %vm523, 1, 0
      %v540 = vcvt.s32.f32 %v524
      %v541 = vcvt.s32.f32 %v525
      %v542 = vcvt.s32.f32 %v526
      %v543 = vcvt.s32.f32 %v527
      %v544 = vcvt.s32.f32 %v528
      %v545 = vcvt.s32.f32 %v529
      %v546 = vcvt.s32.f32 %v530
      %v547 = vcvt.s32.f32 %v531
      %v548 = vcvt.s32.f32 %v532
      %v549 = vcvt.s32.f32 %v533
      %v550 = vcvt.s32.f32 %v534
      %v551 = vcvt.s32.f32 %v535
      %v552 = vcvt.s32.f32 %v536
      %v553 = vcvt.s32.f32 %v537
      %v554 = vcvt.s32.f32 %v538
      %v555 = vcvt.s32.f32 %v539
      %v556 = vpack.c.bf16 %v541, %v540
      %v557 = vpack.c.bf16 %v543, %v542
      %v558 = vpack.c.bf16 %v545, %v544
      %v559 = vpack.c.bf16 %v547, %v546
      %v560 = vpack.c.bf16 %v549, %v548
      %v561 = vpack.c.bf16 %v551, %v550
      %v562 = vpack.c.bf16 %v553, %v552
      %v563 = vpack.c.bf16 %v555, %v554
      %v564 = vld [vmem:[#allocation4] sm:$0xf]
      %vm565 = vcmask 64512
      %v567 = vsel %vm565, %v556, 0
      %v570 = vsel %vm565, %v557, 0
      %v573 = vsel %vm565, %v558, 0
      %v576 = vsel %vm565, %v559, 0
      %v579 = vsel %vm565, %v560, 0
      %v582 = vsel %vm565, %v561, 0
      %v585 = vsel %vm565, %v562, 0
      %v588 = vsel %vm565, %v563, 0
      %vm590 = vcmask 1043456
      %v592 = vsel %vm590, %v564, 0
      %594 = vmatpush.bf16.msra.mxu0 0
      %595 = vmatpush.bf16.msra.mxu0 0
      %596 = vmatpush.bf16.msra.mxu0 0
      %597 = vmatpush.bf16.msra.mxu0 0
      %598 = vmatpush.bf16.msra.mxu0 0
      %599 = vmatpush.bf16.msra.mxu0 0
      %600 = vmatpush.bf16.msra.mxu0 0
      %601 = vmatpush.bf16.msra.mxu0 %v592
      %602 = vmatmul.bf16.gmra.mxu0 %v567
      %v603 = vpop.f32.mrf.mxu0
      %v604 = vadd.f32 0.0, %v603
      %v605 = vpop.f32.mrf.mxu0
      %v606 = vadd.f32 0.0, %v605
      %607 = vmatmul.bf16.gmra.mxu0 %v570
      %v608 = vpop.f32.mrf.mxu0
      %v609 = vadd.f32 0.0, %v608
      %v610 = vpop.f32.mrf.mxu0
      %v611 = vadd.f32 0.0, %v610
      %612 = vmatmul.bf16.gmra.mxu0 %v573
      %v613 = vpop.f32.mrf.mxu0
      %v614 = vadd.f32 0.0, %v613
      %v615 = vpop.f32.mrf.mxu0
      %v616 = vadd.f32 0.0, %v615
      %617 = vmatmul.bf16.gmra.mxu0 %v576
      %v618 = vpop.f32.mrf.mxu0
      %v619 = vadd.f32 0.0, %v618
      %v620 = vpop.f32.mrf.mxu0
      %v621 = vadd.f32 0.0, %v620
      %622 = vmatmul.bf16.gmra.mxu0 %v579
      %v623 = vpop.f32.mrf.mxu0
      %v624 = vadd.f32 0.0, %v623
      %v625 = vpop.f32.mrf.mxu0
      %v626 = vadd.f32 0.0, %v625
      %627 = vmatmul.bf16.gmra.mxu0 %v582
      %v628 = vpop.f32.mrf.mxu0
      %v629 = vadd.f32 0.0, %v628
      %v630 = vpop.f32.mrf.mxu0
      %v631 = vadd.f32 0.0, %v630
      %632 = vmatmul.bf16.gmra.mxu0 %v585
      %v633 = vpop.f32.mrf.mxu0
      %v634 = vadd.f32 0.0, %v633
      %v635 = vpop.f32.mrf.mxu0
      %v636 = vadd.f32 0.0, %v635
      %637 = vmatmul.bf16.gmra.mxu0 %v588
      %v638 = vpop.f32.mrf.mxu0
      %v639 = vadd.f32 0.0, %v638
      %v640 = vpop.f32.mrf.mxu0
      %v641 = vadd.f32 0.0, %v640
      %642 = vdwg.mxu0
      %v643 = vsub.f32 %v604, %v409
      %v644 = vsub.f32 %v606, %v410
      %v645 = vsub.f32 %v609, %v411
      %v646 = vsub.f32 %v611, %v412
      %v647 = vsub.f32 %v614, %v413
      %v648 = vsub.f32 %v616, %v414
      %v649 = vsub.f32 %v619, %v415
      %v650 = vsub.f32 %v621, %v416
      %v651 = vsub.f32 %v624, %v417
      %v652 = vsub.f32 %v626, %v418
      %v653 = vsub.f32 %v629, %v419
      %v654 = vsub.f32 %v631, %v420
      %v655 = vsub.f32 %v634, %v421
      %v656 = vsub.f32 %v636, %v422
      %v657 = vsub.f32 %v639, %v423
      %v658 = vsub.f32 %v641, %v424
      %v659 = vld [vmem:[%s5] sm:$0xff]
      %v660 = vld [vmem:[%s5 + $0x8] sm:$0xff]
      %v661 = vld [vmem:[%s5 + $0x10] sm:$0xff]
      %v662 = vld [vmem:[%s5 + $0x18] sm:$0xff]
      %v663 = vld [vmem:[%s5 + $0x20] sm:$0xff]
      %v664 = vld [vmem:[%s5 + $0x28] sm:$0xff]
      %v665 = vld [vmem:[%s5 + $0x30] sm:$0xff]
      %v666 = vld [vmem:[%s5 + $0x38] sm:$0xff]
      %v667 = vld [vmem:[%s5 + $0x40] sm:$0xff]
      %v668 = vld [vmem:[%s5 + $0x48] sm:$0xff]
      %v669 = vld [vmem:[%s5 + $0x50] sm:$0xff]
      %v670 = vld [vmem:[%s5 + $0x58] sm:$0xff]
      %v671 = vld [vmem:[%s5 + $0x60] sm:$0xff]
      %v672 = vld [vmem:[%s5 + $0x68] sm:$0xff]
      %v673 = vld [vmem:[%s5 + $0x70] sm:$0xff]
      %v674 = vld [vmem:[%s5 + $0x78] sm:$0xff]
      %v675 = vld [vmem:[%s6] sm:$0x1]
      %v677 = vperm.slane %v675, 0
      %679 = vmatpush.msra.mxu0 %v674
      %680 = vmatpush.msra.mxu0 %v673
      %681 = vmatpush.msra.mxu0 %v672
      %682 = vmatpush.msra.mxu0 %v671
      %683 = vmatpush.msra.mxu0 %v670
      %684 = vmatpush.msra.mxu0 %v669
      %685 = vmatpush.msra.mxu0 %v668
      %686 = vmatpush.msra.mxu0 %v667
      %687 = vmatpush.msra.mxu0 %v666
      %688 = vmatpush.msra.mxu0 %v665
      %689 = vmatpush.msra.mxu0 %v664
      %690 = vmatpush.msra.mxu0 %v663
      %691 = vmatpush.msra.mxu0 %v662
      %692 = vmatpush.msra.mxu0 %v661
      %693 = vmatpush.msra.mxu0 %v660
      %694 = vmatpush.msra.mxu0 %v659
      %695 = vmatmul.f32.gmra.mxu0 %v643
      %v696 = vpop.f32.mrf.mxu0
      %v697 = vadd.f32 %v677, %v696
      %698 = vmatmul.f32.gmra.mxu0 %v644
      %v699 = vpop.f32.mrf.mxu0
      %v700 = vadd.f32 %v677, %v699
      %701 = vmatmul.f32.gmra.mxu0 %v645
      %v702 = vpop.f32.mrf.mxu0
      %v703 = vadd.f32 %v677, %v702
      %704 = vmatmul.f32.gmra.mxu0 %v646
      %v705 = vpop.f32.mrf.mxu0
      %v706 = vadd.f32 %v677, %v705
      %707 = vmatmul.f32.gmra.mxu0 %v647
      %v708 = vpop.f32.mrf.mxu0
      %v709 = vadd.f32 %v677, %v708
      %710 = vmatmul.f32.gmra.mxu0 %v648
      %v711 = vpop.f32.mrf.mxu0
      %v712 = vadd.f32 %v677, %v711
      %713 = vmatmul.f32.gmra.mxu0 %v649
      %v714 = vpop.f32.mrf.mxu0
      %v715 = vadd.f32 %v677, %v714
      %716 = vmatmul.f32.gmra.mxu0 %v650
      %v717 = vpop.f32.mrf.mxu0
      %v718 = vadd.f32 %v677, %v717
      %719 = vmatmul.f32.gmra.mxu0 %v651
      %v720 = vpop.f32.mrf.mxu0
      %v721 = vadd.f32 %v677, %v720
      %722 = vmatmul.f32.gmra.mxu0 %v652
      %v723 = vpop.f32.mrf.mxu0
      %v724 = vadd.f32 %v677, %v723
      %725 = vmatmul.f32.gmra.mxu0 %v653
      %v726 = vpop.f32.mrf.mxu0
      %v727 = vadd.f32 %v677, %v726
      %728 = vmatmul.f32.gmra.mxu0 %v654
      %v729 = vpop.f32.mrf.mxu0
      %v730 = vadd.f32 %v677, %v729
      %731 = vmatmul.f32.gmra.mxu0 %v655
      %v732 = vpop.f32.mrf.mxu0
      %v733 = vadd.f32 %v677, %v732
      %734 = vmatmul.f32.gmra.mxu0 %v656
      %v735 = vpop.f32.mrf.mxu0
      %v736 = vadd.f32 %v677, %v735
      %737 = vmatmul.f32.gmra.mxu0 %v657
      %v738 = vpop.f32.mrf.mxu0
      %v739 = vadd.f32 %v677, %v738
      %740 = vmatmul.f32.gmra.mxu0 %v658
      %v741 = vpop.f32.mrf.mxu0
      %v742 = vadd.f32 %v677, %v741
      %743 = vdwg.mxu0
      %v744 = vmax.f32 %v697, 0.0
      %v745 = vmax.f32 %v700, 0.0
      %v746 = vmax.f32 %v703, 0.0
      %v747 = vmax.f32 %v706, 0.0
      %v748 = vmax.f32 %v709, 0.0
      %v749 = vmax.f32 %v712, 0.0
      %v750 = vmax.f32 %v715, 0.0
      %v751 = vmax.f32 %v718, 0.0
      %v752 = vmax.f32 %v721, 0.0
      %v753 = vmax.f32 %v724, 0.0
      %v754 = vmax.f32 %v727, 0.0
      %v755 = vmax.f32 %v730, 0.0
      %v756 = vmax.f32 %v733, 0.0
      %v757 = vmax.f32 %v736, 0.0
      %v758 = vmax.f32 %v739, 0.0
      %v759 = vmax.f32 %v742, 0.0
      %v760 = vld [vmem:[%s7] sm:$0xff]
      %v761 = vld [vmem:[%s7 + $0x8] sm:$0xff]
      %v762 = vld [vmem:[%s7 + $0x10] sm:$0xff]
      %v763 = vld [vmem:[%s7 + $0x18] sm:$0xff]
      %v764 = vld [vmem:[%s7 + $0x20] sm:$0xff]
      %v765 = vld [vmem:[%s7 + $0x28] sm:$0xff]
      %v766 = vld [vmem:[%s7 + $0x30] sm:$0xff]
      %v767 = vld [vmem:[%s7 + $0x38] sm:$0xff]
      %v768 = vld [vmem:[%s7 + $0x40] sm:$0xff]
      %v769 = vld [vmem:[%s7 + $0x48] sm:$0xff]
      %v770 = vld [vmem:[%s7 + $0x50] sm:$0xff]
      %v771 = vld [vmem:[%s7 + $0x58] sm:$0xff]
      %v772 = vld [vmem:[%s7 + $0x60] sm:$0xff]
      %v773 = vld [vmem:[%s7 + $0x68] sm:$0xff]
      %v774 = vld [vmem:[%s7 + $0x70] sm:$0xff]
      %v775 = vld [vmem:[%s7 + $0x78] sm:$0xff]
      %v776 = vld [vmem:[%s8] sm:$0x1]
      %v778 = vperm.slane %v776, 0
      %780 = vmatpush.msra.mxu0 %v775
      %781 = vmatpush.msra.mxu0 %v774
      %782 = vmatpush.msra.mxu0 %v773
      %783 = vmatpush.msra.mxu0 %v772
      %784 = vmatpush.msra.mxu0 %v771
      %785 = vmatpush.msra.mxu0 %v770
      %786 = vmatpush.msra.mxu0 %v769
      %787 = vmatpush.msra.mxu0 %v768
      %788 = vmatpush.msra.mxu0 %v767
      %789 = vmatpush.msra.mxu0 %v766
      %790 = vmatpush.msra.mxu0 %v765
      %791 = vmatpush.msra.mxu0 %v764
      %792 = vmatpush.msra.mxu0 %v763
      %793 = vmatpush.msra.mxu0 %v762
      %794 = vmatpush.msra.mxu0 %v761
      %795 = vmatpush.msra.mxu0 %v760
      %796 = vmatmul.f32.gmra.mxu0 %v744
      %v797 = vpop.f32.mrf.mxu0
      %v798 = vadd.f32 %v778, %v797
      %799 = vmatmul.f32.gmra.mxu0 %v745
      %v800 = vpop.f32.mrf.mxu0
      %v801 = vadd.f32 %v778, %v800
      %802 = vmatmul.f32.gmra.mxu0 %v746
      %v803 = vpop.f32.mrf.mxu0
      %v804 = vadd.f32 %v778, %v803
      %805 = vmatmul.f32.gmra.mxu0 %v747
      %v806 = vpop.f32.mrf.mxu0
      %v807 = vadd.f32 %v778, %v806
      %808 = vmatmul.f32.gmra.mxu0 %v748
      %v809 = vpop.f32.mrf.mxu0
      %v810 = vadd.f32 %v778, %v809
      %811 = vmatmul.f32.gmra.mxu0 %v749
      %v812 = vpop.f32.mrf.mxu0
      %v813 = vadd.f32 %v778, %v812
      %814 = vmatmul.f32.gmra.mxu0 %v750
      %v815 = vpop.f32.mrf.mxu0
      %v816 = vadd.f32 %v778, %v815
      %817 = vmatmul.f32.gmra.mxu0 %v751
      %v818 = vpop.f32.mrf.mxu0
      %v819 = vadd.f32 %v778, %v818
      %820 = vmatmul.f32.gmra.mxu0 %v752
      %v821 = vpop.f32.mrf.mxu0
      %v822 = vadd.f32 %v778, %v821
      %823 = vmatmul.f32.gmra.mxu0 %v753
      %v824 = vpop.f32.mrf.mxu0
      %v825 = vadd.f32 %v778, %v824
      %826 = vmatmul.f32.gmra.mxu0 %v754
      %v827 = vpop.f32.mrf.mxu0
      %v828 = vadd.f32 %v778, %v827
      %829 = vmatmul.f32.gmra.mxu0 %v755
      %v830 = vpop.f32.mrf.mxu0
      %v831 = vadd.f32 %v778, %v830
      %832 = vmatmul.f32.gmra.mxu0 %v756
      %v833 = vpop.f32.mrf.mxu0
      %v834 = vadd.f32 %v778, %v833
      %835 = vmatmul.f32.gmra.mxu0 %v757
      %v836 = vpop.f32.mrf.mxu0
      %v837 = vadd.f32 %v778, %v836
      %838 = vmatmul.f32.gmra.mxu0 %v758
      %v839 = vpop.f32.mrf.mxu0
      %v840 = vadd.f32 %v778, %v839
      %841 = vmatmul.f32.gmra.mxu0 %v759
      %v842 = vpop.f32.mrf.mxu0
      %v843 = vadd.f32 %v778, %v842
      %844 = vdwg.mxu0
      %v845 = vadd.f32 %v426, %v798
      %v846 = vadd.f32 %v427, %v801
      %v847 = vadd.f32 %v428, %v804
      %v848 = vadd.f32 %v429, %v807
      %v849 = vadd.f32 %v430, %v810
      %v850 = vadd.f32 %v431, %v813
      %v851 = vadd.f32 %v432, %v816
      %v852 = vadd.f32 %v433, %v819
      %v853 = vadd.f32 %v434, %v822
      %v854 = vadd.f32 %v435, %v825
      %v855 = vadd.f32 %v436, %v828
      %v856 = vadd.f32 %v437, %v831
      %v857 = vadd.f32 %v438, %v834
      %v858 = vadd.f32 %v439, %v837
      %v859 = vadd.f32 %v440, %v840
      %v860 = vadd.f32 %v441, %v843
      %v861 = vmax.f32 %v845, 0.0
      %v862 = vmax.f32 %v846, 0.0
      %v863 = vmax.f32 %v847, 0.0
      %v864 = vmax.f32 %v848, 0.0
      %v865 = vmax.f32 %v849, 0.0
      %v866 = vmax.f32 %v850, 0.0
      %v867 = vmax.f32 %v851, 0.0
      %v868 = vmax.f32 %v852, 0.0
      %v869 = vmax.f32 %v853, 0.0
      %v870 = vmax.f32 %v854, 0.0
      %v871 = vmax.f32 %v855, 0.0
      %v872 = vmax.f32 %v856, 0.0
      %v873 = vmax.f32 %v857, 0.0
      %v874 = vmax.f32 %v858, 0.0
      %v875 = vmax.f32 %v859, 0.0
      %v876 = vmax.f32 %v860, 0.0
      %877 = vst [vmem:[%s408] sm:$0xff] %v861
      %878 = vst [vmem:[%s408 + $0x8] sm:$0xff] %v862
      %879 = vst [vmem:[%s408 + $0x10] sm:$0xff] %v863
      %880 = vst [vmem:[%s408 + $0x18] sm:$0xff] %v864
      %881 = vst [vmem:[%s408 + $0x20] sm:$0xff] %v865
      %882 = vst [vmem:[%s408 + $0x28] sm:$0xff] %v866
      %883 = vst [vmem:[%s408 + $0x30] sm:$0xff] %v867
      %884 = vst [vmem:[%s408 + $0x38] sm:$0xff] %v868
      %885 = vst [vmem:[%s408 + $0x40] sm:$0xff] %v869
      %886 = vst [vmem:[%s408 + $0x48] sm:$0xff] %v870
      %887 = vst [vmem:[%s408 + $0x50] sm:$0xff] %v871
      %888 = vst [vmem:[%s408 + $0x58] sm:$0xff] %v872
      %889 = vst [vmem:[%s408 + $0x60] sm:$0xff] %v873
      %890 = vst [vmem:[%s408 + $0x68] sm:$0xff] %v874
      %891 = vst [vmem:[%s408 + $0x70] sm:$0xff] %v875
      %892 = vst [vmem:[%s408 + $0x78] sm:$0xff] %v876
      %p893 = scmp.eq.s32.totalorder %s24, 2
      %v894 = vld [vmem:[%s359] sm:$0x1]
      %v895 = vld [vmem:[%s356] sm:$0x1]
      %s896 = scalar_select %p893, 1, 0
      %v897 = vstv %s896
      %vm898 = vcmp.eq.s32.totalorder %v897, 1
      %v899 = vsel %vm898, %v894, %v895
      %v900 = vlaneseq
      %v901 = vshrl.u32 %v900, 7
      %v902 = vperm.slane %v899, 0
      %vm903 = vcmp.eq.s32.totalorder %v901, %v902
      %v904 = vsel %vm903, 1, 0
      %v905 = vcvt.s32.f32 %v904
      %v906 = vpack.c.bf16 %v905, %v905
      %v907 = vpack.c.bf16 %v862, %v861
      %v908 = vpack.c.bf16 %v864, %v863
      %v909 = vpack.c.bf16 %v866, %v865
      %v910 = vpack.c.bf16 %v868, %v867
      %v911 = vpack.c.bf16 %v870, %v869
      %v912 = vpack.c.bf16 %v872, %v871
      %v913 = vpack.c.bf16 %v874, %v873
      %v914 = vpack.c.bf16 %v876, %v875
      %915 = vmatpush.bf16.msra.mxu0 %v914
      %916 = vmatpush.bf16.msra.mxu0 %v913
      %917 = vmatpush.bf16.msra.mxu0 %v912
      %918 = vmatpush.bf16.msra.mxu0 %v911
      %919 = vmatpush.bf16.msra.mxu0 %v910
      %920 = vmatpush.bf16.msra.mxu0 %v909
      %921 = vmatpush.bf16.msra.mxu0 %v908
      %922 = vmatpush.bf16.msra.mxu0 %v907
      %923 = vmatmul.bf16.gmra.mxu0 %v906
      %v924 = vpop.f32.mrf.mxu0
      %v925 = vadd.f32 0.0, %v924
      %v926 = vpop.f32.mrf.mxu0
      %927 = vdwg.mxu0
      // Predicated region
      $region65: #{directed_message_passing.4} parent=55 // pred_check
        %p928 = pneg %p362
      $region66: #{directed_message_passing.4} parent=55 // pred_check_branch
        %930 = sbr.rel (%p928) target = $region68
      $region67: #{directed_message_passing.4} parent=55 // pred_region
        %931 = vst [vmem:[#allocation3] sm:$0xff] %v925
      $region68: #{directed_message_passing.4} parent=55 // pred_fallthru
        _
      %p932 = scmp.gt.s32.totalorder %s25, 0
      // Predicated region
      $region69: #{directed_message_passing.4} parent=55 // pred_check
        %p933 = pneg %p932
      $region70: #{directed_message_passing.4} parent=55 // pred_check_branch
        %935 = sbr.rel (%p933) target = $region72
      $region71: #{directed_message_passing.4} parent=55 // pred_region
        %v936 = vld [vmem:[#allocation3] sm:$0xff]
        %v937 = vadd.f32 %v936, %v925
        %938 = vst [vmem:[#allocation3] sm:$0xff] %v937
      $region72: #{directed_message_passing.4} parent=55 // pred_fallthru
        _
      %p939 = pnand %p893, %p362
      %p940 = pneg %p939
      // Predicated region
      $region73: #{directed_message_passing.4} parent=55 // pred_check
        _
      $region74: #{directed_message_passing.4} parent=55 // pred_check_branch
        %942 = sbr.rel (%p939) target = $region76
      $region75: #{directed_message_passing.4} parent=55 // pred_region
        %v943 = vld [vmem:[#allocation3] sm:$0xff]
        %944 = vst [vmem:[%s9] sm:$0xff] %v943
      $region76: #{directed_message_passing.4} parent=55 // pred_fallthru
        _
      // Predicated region
      $region77: #{directed_message_passing.4} parent=55 // pred_check
        %p945 = pneg %p249
      $region78: #{directed_message_passing.4} parent=55 // pred_check_branch
        %947 = sbr.rel (%p945) target = $region80
      $region79: #{directed_message_passing.4} parent=55 // pred_region
        _
      $region80: #{directed_message_passing.4} parent=55 // pred_fallthru
        _
      // Predicated region
      $region81: #{directed_message_passing.4} parent=55 // pred_check
        %p948 = pneg %p249
      $region82: #{directed_message_passing.4} parent=55 // pred_check_branch
        %950 = sbr.rel (%p948) target = $region84
      $region83: #{directed_message_passing.4} parent=55 // pred_region
        _
      $region84: #{directed_message_passing.4} parent=55 // pred_fallthru
        _
    $region56: #{directed_message_passing.4} parent=5 // pred_fallthru
      _
    %p951 = scmp.le.s32.totalorder 2, %s15
    // Predicated region
    $region85: #{directed_message_passing.4} parent=5 // pred_check
      %p952 = pneg %p951
    $region86: #{directed_message_passing.4} parent=5 // pred_check_branch
      %954 = sbr.rel (%p952) target = $region88
    $region87: #{directed_message_passing.4} parent=5 // pred_region
      %s955 = ssub.s32 %s15, 2
    $region88: #{directed_message_passing.4} parent=5 // pred_fallthru
      _
  $region6: #{directed_message_passing.4} parent=0 // loop_footer
    %s19 = sadd.s32 1, %s15
  $region7: #{directed_message_passing.4} parent=0 // loop_footer_branch
    %14 = sbr.rel target = $region3
  $region8: #{directed_message_passing.4} parent=0 // loop_exit
    _

</llo_original>
